<compile_context>
chip_gen: v5e
topology: v5e:2x2
jax: 0.10.0
libtpu: 0.0.40
codegen_flags: <defaults>
</compile_context>

<pallas_src>
import jax
import jax.numpy as jnp
from jax.experimental import pallas as pl
from jax.experimental.pallas import tpu as pltpu


def _fused_ae_kernel(x_ref,
                     w1, b1, w2, b2, w3, b3,
                     wpq, bpq,
                     w5, b5, w6, b6, w7, b7,
                     o_ref, pad_ref):
    """Whole autoencoder forward for one batch element, fully VMEM resident.

    x_ref  : (1, L, C_in)      input activation tile
    w*     : (3, C_in, C_out)  conv3 weights (w3 = enc_out folded w/ quant_conv)
    b*     : (1, C_out)        biases
    wpq    : (embed, z_ch)     post_quant_conv 1x1 weight;  bpq: (1, z_ch)
    o_ref  : (1, L, C_in)      reconstruction tile
    pad_ref: (L + 2, C_max)    f32 scratch; rows 0 and L+1 are the zero halo
    """
    L = x_ref.shape[1]

    # Zero the halo slab once.  Rows 0 and L+1 are never written afterwards,
    # so every conv layer sees correct zero "same" padding in any channel range.
    pad_ref[...] = jnp.zeros_like(pad_ref)

    def conv3(a, w_ref, b_ref, act):
        # a: (L, cin).  Conv1d(k=3, stride=1, pad=1) as 3 shifted MXU matmuls
        # read out of the zero-halo slab (no jnp.pad, no HBM round trip).
        cin = a.shape[-1]
        cout = w_ref.shape[-1]
        pad_ref[1:L + 1, :cin] = a
        acc = jnp.zeros((L, cout), jnp.float32)
        for t in range(3):
            acc = acc + jnp.dot(pad_ref[t:t + L, :cin], w_ref[t],
                                preferred_element_type=jnp.float32)
        acc = acc + b_ref[...]                 # (1, cout) broadcasts over L
        if act:
            acc = acc * jax.nn.sigmoid(acc)    # SiLU / swish (EUP)
        return acc

    x = x_ref[0].astype(jnp.float32)           # (L, C_in)
    h = conv3(x, w1, b1, act=True)             # Encoder conv_in  + SiLU
    h = conv3(h, w2, b2, act=True)             # Encoder mid      + SiLU
    z = conv3(h, w3, b3, act=False)            # Encoder conv_out ∘ quant_conv
    h = jnp.dot(z, wpq[...],
                preferred_element_type=jnp.float32) + bpq[...]   # post_quant 1x1
    h = conv3(h, w5, b5, act=True)             # Decoder conv_in  + SiLU
    h = conv3(h, w6, b6, act=True)             # Decoder mid      + SiLU
    dec = conv3(h, w7, b7, act=False)          # Decoder conv_out
    o_ref[0] = dec.astype(o_ref.dtype)


def _rep_spec(arr):
    """BlockSpec that replicates a full (weight) array to every grid step."""
    nd = arr.ndim
    return pl.BlockSpec(arr.shape, lambda i, _nd=nd: (0,) * _nd)


def _init_conv(key, cin, cout, k, scale=0.05):
    """Deterministic synthetic Conv1d params (PyTorch shape (cout, cin, k))."""
    kw, kb = jax.random.split(key)
    w = jax.random.normal(kw, (cout, cin, k), jnp.float32) * scale
    b = jax.random.normal(kb, (cout,), jnp.float32) * scale
    # permute to kernel layout (k, cin, cout)
    return jnp.transpose(w, (2, 1, 0)), b


class AutoencoderPallas:
    """JAX/Pallas port of Autoencoder.forward (encode -> decode -> reshape)."""

    def __init__(self, in_channels=4, ch=32, z_channels=8, embed_dim=8, seed=0):
        key = jax.random.PRNGKey(seed)
        ks = jax.random.split(key, 8)
        # TODO(synk): upstream Encoder/Decoder definitions are not provided in
        # the reference file; using a minimal 3-layer Conv1d(+SiLU) stack for
        # each, consistent with double_z (encoder emits 2*z_channels).
        self.enc_in = _init_conv(ks[0], in_channels, ch, 3)
        self.enc_mid = _init_conv(ks[1], ch, ch, 3)
        self.enc_out = _init_conv(ks[2], ch, 2 * z_channels, 3)
        self.quant_conv = _init_conv(ks[3], 2 * z_channels, embed_dim, 1)
        self.post_quant_conv = _init_conv(ks[4], embed_dim, z_channels, 1)
        self.dec_in = _init_conv(ks[5], z_channels, ch, 3)
        self.dec_mid = _init_conv(ks[6], ch, ch, 3)
        self.dec_out = _init_conv(ks[7], ch, in_channels, 3)

        # ---- one-time weight preprocessing for the fused kernel ----
        # Fold enc_out (k=3, linear) with quant_conv (1x1, linear): two
        # consecutive affine maps are one affine map.  Exact (only FP
        # summation order differs from the unfused reference).
        w_q = self.quant_conv[0][0]                        # (2z, embed)
        w3 = jnp.einsum('kio,oj->kij', self.enc_out[0], w_q)
        b3 = self.enc_out[1] @ w_q + self.quant_conv[1]
        wpq = self.post_quant_conv[0][0]                   # (embed, z)
        bpq = self.post_quant_conv[1]

        def wb(w, b):
            return w, b.reshape(1, -1)

        self._flat_params = []
        for w, b in (wb(*self.enc_in), wb(*self.enc_mid), wb(w3, b3),
                     wb(wpq, bpq),
                     wb(*self.dec_in), wb(*self.dec_mid), wb(*self.dec_out)):
            self._flat_params += [w, b]
        self._cmax = max(ch, in_channels, z_channels, embed_dim)

    # ---- fused forward on channels-last activations ----
    def _forward_nlc(self, x_nlc):
        B, L, Cin = x_nlc.shape
        in_specs = [pl.BlockSpec((1, L, Cin), lambda i: (i, 0, 0))]
        in_specs += [_rep_spec(p) for p in self._flat_params]
        return pl.pallas_call(
            _fused_ae_kernel,
            out_shape=jax.ShapeDtypeStruct((B, L, Cin), x_nlc.dtype),
            grid=(B,),
            in_specs=in_specs,
            out_specs=pl.BlockSpec((1, L, Cin), lambda i: (i, 0, 0)),
            scratch_shapes=[pltpu.VMEM((L + 2, self._cmax), jnp.float32)],
            compiler_params=pltpu.CompilerParams(
                dimension_semantics=("parallel",)),
        )(x_nlc, *self._flat_params)

    def __call__(self, x_ncl):
        # PyTorch NCL -> channels-last NLC for the kernel (1 tiny op each way).
        x_nlc = jnp.transpose(x_ncl, (0, 2, 1))
        dec_nlc = self._forward_nlc(x_nlc)
        dec_ncl = jnp.transpose(dec_nlc, (0, 2, 1)).reshape(x_ncl.shape)
        return x_ncl, dec_ncl

    # ---- pure-JAX unfused reference (correctness check only) ----
    @staticmethod
    def _conv_ref(x, w_kio, b, padding, act):
        k = w_kio.shape[0]
        Lout = x.shape[1] + 2 * padding - (k - 1)
        xp = jnp.pad(x, ((0, 0), (padding, padding), (0, 0)))
        out = sum(jnp.einsum('blc,co->blo', xp[:, t:t + Lout, :], w_kio[t])
                  for t in range(k)) + b
        return out * jax.nn.sigmoid(out) if act else out

    def reference_forward(self, x_ncl):
        x = jnp.transpose(x_ncl, (0, 2, 1))
        h = self._conv_ref(x, *self.enc_in, 1, True)
        h = self._conv_ref(h, *self.enc_mid, 1, True)
        h = self._conv_ref(h, *self.enc_out, 1, False)
        z = self._conv_ref(h, *self.quant_conv, 0, False)
        h = self._conv_ref(z, *self.post_quant_conv, 0, False)
        h = self._conv_ref(h, *self.dec_in, 1, True)
        h = self._conv_ref(h, *self.dec_mid, 1, True)
        dec = self._conv_ref(h, *self.dec_out, 1, False)
        return jnp.transpose(dec, (0, 2, 1)).reshape(x_ncl.shape)


if __name__ == "__main__":
    B, C, L = 2, 4, 16  # (batch, in_channels, length) — PyTorch NCL
    key = jax.random.PRNGKey(0)
    x = jax.random.normal(key, (B, C, L), jnp.float32)

    model = AutoencoderPallas(in_channels=C, ch=32, z_channels=8,
                              embed_dim=8, seed=0)
    inputs, reconstructions = jax.jit(model.__call__)(x)
    jax.block_until_ready(reconstructions)

    assert inputs.shape == x.shape
    assert reconstructions.shape == x.shape
    assert reconstructions.dtype == x.dtype

    # Numerical check against the unfused pure-JAX reference (folding only
    # reorders FP sums, so agreement should be near machine precision).
    rec_ref = model.reference_forward(x)
    max_err = float(jnp.max(jnp.abs(reconstructions - rec_ref)))
    assert jnp.allclose(reconstructions, rec_ref, rtol=1e-4, atol=1e-6), max_err

    print("KERNEL_OK")
</pallas_src>

<mosaic_0001>
module attributes {stable_mosaic.version = 11 : i64} {
  func.func @_fused_ae_kernel(%arg0: i32, %arg1: memref<1x16x4xf32, #tpu.memory_space<vmem>>, %arg2: memref<3x4x32xf32, #tpu.memory_space<vmem>>, %arg3: memref<1x32xf32, #tpu.memory_space<vmem>>, %arg4: memref<3x32x32xf32, #tpu.memory_space<vmem>>, %arg5: memref<1x32xf32, #tpu.memory_space<vmem>>, %arg6: memref<3x32x8xf32, #tpu.memory_space<vmem>>, %arg7: memref<1x8xf32, #tpu.memory_space<vmem>>, %arg8: memref<8x8xf32, #tpu.memory_space<vmem>>, %arg9: memref<1x8xf32, #tpu.memory_space<vmem>>, %arg10: memref<3x8x32xf32, #tpu.memory_space<vmem>>, %arg11: memref<1x32xf32, #tpu.memory_space<vmem>>, %arg12: memref<3x32x32xf32, #tpu.memory_space<vmem>>, %arg13: memref<1x32xf32, #tpu.memory_space<vmem>>, %arg14: memref<3x32x4xf32, #tpu.memory_space<vmem>>, %arg15: memref<1x4xf32, #tpu.memory_space<vmem>>, %arg16: memref<1x16x4xf32, #tpu.memory_space<vmem>>, %arg17: memref<18x32xf32, #tpu.memory_space<vmem>>) attributes {dimension_semantics = [#tpu.dimension_semantics<parallel>], iteration_bounds = array<i64: 2>, scalar_prefetch = 0 : i64, scratch_operands = 1 : i64, tpu.core_type = #tpu.core_type<tc>, window_params = [{transform_indices = @transform_0, window_bounds = array<i64: 1, 16, 4>}, {pipeline_mode = #tpu.pipeline_mode<synchronous>, transform_indices = @transform_1, window_bounds = array<i64: 3, 4, 32>}, {pipeline_mode = #tpu.pipeline_mode<synchronous>, transform_indices = @transform_2, window_bounds = array<i64: 1, 32>}, {pipeline_mode = #tpu.pipeline_mode<synchronous>, transform_indices = @transform_3, window_bounds = array<i64: 3, 32, 32>}, {pipeline_mode = #tpu.pipeline_mode<synchronous>, transform_indices = @transform_4, window_bounds = array<i64: 1, 32>}, {pipeline_mode = #tpu.pipeline_mode<synchronous>, transform_indices = @transform_5, window_bounds = array<i64: 3, 32, 8>}, {pipeline_mode = #tpu.pipeline_mode<synchronous>, transform_indices = @transform_6, window_bounds = array<i64: 1, 8>}, {pipeline_mode = #tpu.pipeline_mode<synchronous>, transform_indices = @transform_7, window_bounds = array<i64: 8, 8>}, {pipeline_mode = #tpu.pipeline_mode<synchronous>, transform_indices = @transform_8, window_bounds = array<i64: 1, 8>}, {pipeline_mode = #tpu.pipeline_mode<synchronous>, transform_indices = @transform_9, window_bounds = array<i64: 3, 8, 32>}, {pipeline_mode = #tpu.pipeline_mode<synchronous>, transform_indices = @transform_10, window_bounds = array<i64: 1, 32>}, {pipeline_mode = #tpu.pipeline_mode<synchronous>, transform_indices = @transform_11, window_bounds = array<i64: 3, 32, 32>}, {pipeline_mode = #tpu.pipeline_mode<synchronous>, transform_indices = @transform_12, window_bounds = array<i64: 1, 32>}, {pipeline_mode = #tpu.pipeline_mode<synchronous>, transform_indices = @transform_13, window_bounds = array<i64: 3, 32, 4>}, {pipeline_mode = #tpu.pipeline_mode<synchronous>, transform_indices = @transform_14, window_bounds = array<i64: 1, 4>}, {transform_indices = @transform_15, window_bounds = array<i64: 1, 16, 4>}]} {
    %cst = arith.constant 0.000000e+00 : f32
    %0 = vector.broadcast %cst : f32 to vector<18x32xf32>
    %c0 = arith.constant 0 : index
    %c0_0 = arith.constant 0 : index
    %1 = vector.load %arg17[%c0, %c0_0] : memref<18x32xf32, #tpu.memory_space<vmem>>, vector<18x32xf32>
    tpu.vector_store %arg17[%c0, %c0_0], %0 {strides = array<i32>} : memref<18x32xf32, #tpu.memory_space<vmem>>, vector<18x32xf32>,
    %c0_1 = arith.constant 0 : index
    %c0_2 = arith.constant 0 : index
    %c0_3 = arith.constant 0 : index
    %2 = vector.load %arg1[%c0_1, %c0_2, %c0_3] : memref<1x16x4xf32, #tpu.memory_space<vmem>>, vector<1x16x4xf32>
    %3 = vector.shape_cast %2 : vector<1x16x4xf32> to vector<16x4xf32>
    %c1 = arith.constant 1 : index
    %c0_4 = arith.constant 0 : index
    %4 = vector.load %arg17[%c1, %c0_4] : memref<18x32xf32, #tpu.memory_space<vmem>>, vector<16x4xf32>
    tpu.vector_store %arg17[%c1, %c0_4], %3 {strides = array<i32>} : memref<18x32xf32, #tpu.memory_space<vmem>>, vector<16x4xf32>,
    %cst_5 = arith.constant 0.000000e+00 : f32
    %5 = vector.broadcast %cst_5 : f32 to vector<16x32xf32>
    %c0_6 = arith.constant 0 : index
    %c0_7 = arith.constant 0 : index
    %6 = vector.load %arg17[%c0_6, %c0_7] : memref<18x32xf32, #tpu.memory_space<vmem>>, vector<16x4xf32>
    %c0_8 = arith.constant 0 : index
    %c0_9 = arith.constant 0 : index
    %c0_10 = arith.constant 0 : index
    %7 = vector.load %arg2[%c0_8, %c0_9, %c0_10] : memref<3x4x32xf32, #tpu.memory_space<vmem>>, vector<1x4x32xf32>
    %8 = vector.shape_cast %7 : vector<1x4x32xf32> to vector<4x32xf32>
    %cst_11 = arith.constant dense<0.000000e+00> : vector<16x32xf32>
    %9 = tpu.matmul %6, %8, %cst_11 {dimension_numbers = #tpu.dot_dimension_numbers<[1], [0], [0], [1], [0, 0, 1, 1], [], []>} : vector<16x4xf32>, vector<4x32xf32>, vector<16x32xf32> -> vector<16x32xf32>
    %10 = arith.addf %5, %9 : vector<16x32xf32>
    %c1_12 = arith.constant 1 : index
    %c0_13 = arith.constant 0 : index
    %11 = vector.load %arg17[%c1_12, %c0_13] : memref<18x32xf32, #tpu.memory_space<vmem>>, vector<16x4xf32>
    %c1_14 = arith.constant 1 : index
    %c0_15 = arith.constant 0 : index
    %c0_16 = arith.constant 0 : index
    %12 = vector.load %arg2[%c1_14, %c0_15, %c0_16] : memref<3x4x32xf32, #tpu.memory_space<vmem>>, vector<1x4x32xf32>
    %13 = vector.shape_cast %12 : vector<1x4x32xf32> to vector<4x32xf32>
    %cst_17 = arith.constant dense<0.000000e+00> : vector<16x32xf32>
    %14 = tpu.matmul %11, %13, %cst_17 {dimension_numbers = #tpu.dot_dimension_numbers<[1], [0], [0], [1], [0, 0, 1, 1], [], []>} : vector<16x4xf32>, vector<4x32xf32>, vector<16x32xf32> -> vector<16x32xf32>
    %15 = arith.addf %10, %14 : vector<16x32xf32>
    %c2 = arith.constant 2 : index
    %c0_18 = arith.constant 0 : index
    %16 = vector.load %arg17[%c2, %c0_18] : memref<18x32xf32, #tpu.memory_space<vmem>>, vector<16x4xf32>
    %c2_19 = arith.constant 2 : index
    %c0_20 = arith.constant 0 : index
    %c0_21 = arith.constant 0 : index
    %17 = vector.load %arg2[%c2_19, %c0_20, %c0_21] : memref<3x4x32xf32, #tpu.memory_space<vmem>>, vector<1x4x32xf32>
    %18 = vector.shape_cast %17 : vector<1x4x32xf32> to vector<4x32xf32>
    %cst_22 = arith.constant dense<0.000000e+00> : vector<16x32xf32>
    %19 = tpu.matmul %16, %18, %cst_22 {dimension_numbers = #tpu.dot_dimension_numbers<[1], [0], [0], [1], [0, 0, 1, 1], [], []>} : vector<16x4xf32>, vector<4x32xf32>, vector<16x32xf32> -> vector<16x32xf32>
    %20 = arith.addf %15, %19 : vector<16x32xf32>
    %c0_23 = arith.constant 0 : index
    %c0_24 = arith.constant 0 : index
    %21 = vector.load %arg3[%c0_23, %c0_24] : memref<1x32xf32, #tpu.memory_space<vmem>>, vector<1x32xf32>
    %22 = vector.broadcast %21 : vector<1x32xf32> to vector<16x32xf32>
    %23 = arith.addf %20, %22 : vector<16x32xf32>
    %24 = arith.negf %23 : vector<16x32xf32>
    %25 = math.exp %24 : vector<16x32xf32>
    %cst_25 = arith.constant 1.000000e+00 : f32
    %26 = vector.broadcast %cst_25 : f32 to vector<16x32xf32>
    %27 = arith.addf %26, %25 : vector<16x32xf32>
    %28 = arith.divf %26, %27 : vector<16x32xf32>
    %29 = arith.mulf %23, %28 : vector<16x32xf32>
    %c1_26 = arith.constant 1 : index
    %c0_27 = arith.constant 0 : index
    %30 = vector.load %arg17[%c1_26, %c0_27] : memref<18x32xf32, #tpu.memory_space<vmem>>, vector<16x32xf32>
    tpu.vector_store %arg17[%c1_26, %c0_27], %29 {strides = array<i32>} : memref<18x32xf32, #tpu.memory_space<vmem>>, vector<16x32xf32>,
    %cst_28 = arith.constant 0.000000e+00 : f32
    %31 = vector.broadcast %cst_28 : f32 to vector<16x32xf32>
    %c0_29 = arith.constant 0 : index
    %c0_30 = arith.constant 0 : index
    %32 = vector.load %arg17[%c0_29, %c0_30] : memref<18x32xf32, #tpu.memory_space<vmem>>, vector<16x32xf32>
    %c0_31 = arith.constant 0 : index
    %c0_32 = arith.constant 0 : index
    %c0_33 = arith.constant 0 : index
    %33 = vector.load %arg4[%c0_31, %c0_32, %c0_33] : memref<3x32x32xf32, #tpu.memory_space<vmem>>, vector<1x32x32xf32>
    %34 = vector.shape_cast %33 : vector<1x32x32xf32> to vector<32x32xf32>
    %cst_34 = arith.constant dense<0.000000e+00> : vector<16x32xf32>
    %35 = tpu.matmul %32, %34, %cst_34 {dimension_numbers = #tpu.dot_dimension_numbers<[1], [0], [0], [1], [0, 0, 1, 1], [], []>} : vector<16x32xf32>, vector<32x32xf32>, vector<16x32xf32> -> vector<16x32xf32>
    %36 = arith.addf %31, %35 : vector<16x32xf32>
    %c1_35 = arith.constant 1 : index
    %c0_36 = arith.constant 0 : index
    %37 = vector.load %arg17[%c1_35, %c0_36] : memref<18x32xf32, #tpu.memory_space<vmem>>, vector<16x32xf32>
    %c1_37 = arith.constant 1 : index
    %c0_38 = arith.constant 0 : index
    %c0_39 = arith.constant 0 : index
    %38 = vector.load %arg4[%c1_37, %c0_38, %c0_39] : memref<3x32x32xf32, #tpu.memory_space<vmem>>, vector<1x32x32xf32>
    %39 = vector.shape_cast %38 : vector<1x32x32xf32> to vector<32x32xf32>
    %cst_40 = arith.constant dense<0.000000e+00> : vector<16x32xf32>
    %40 = tpu.matmul %37, %39, %cst_40 {dimension_numbers = #tpu.dot_dimension_numbers<[1], [0], [0], [1], [0, 0, 1, 1], [], []>} : vector<16x32xf32>, vector<32x32xf32>, vector<16x32xf32> -> vector<16x32xf32>
    %41 = arith.addf %36, %40 : vector<16x32xf32>
    %c2_41 = arith.constant 2 : index
    %c0_42 = arith.constant 0 : index
    %42 = vector.load %arg17[%c2_41, %c0_42] : memref<18x32xf32, #tpu.memory_space<vmem>>, vector<16x32xf32>
    %c2_43 = arith.constant 2 : index
    %c0_44 = arith.constant 0 : index
    %c0_45 = arith.constant 0 : index
    %43 = vector.load %arg4[%c2_43, %c0_44, %c0_45] : memref<3x32x32xf32, #tpu.memory_space<vmem>>, vector<1x32x32xf32>
    %44 = vector.shape_cast %43 : vector<1x32x32xf32> to vector<32x32xf32>
    %cst_46 = arith.constant dense<0.000000e+00> : vector<16x32xf32>
    %45 = tpu.matmul %42, %44, %cst_46 {dimension_numbers = #tpu.dot_dimension_numbers<[1], [0], [0], [1], [0, 0, 1, 1], [], []>} : vector<16x32xf32>, vector<32x32xf32>, vector<16x32xf32> -> vector<16x32xf32>
    %46 = arith.addf %41, %45 : vector<16x32xf32>
    %c0_47 = arith.constant 0 : index
    %c0_48 = arith.constant 0 : index
    %47 = vector.load %arg5[%c0_47, %c0_48] : memref<1x32xf32, #tpu.memory_space<vmem>>, vector<1x32xf32>
    %48 = vector.broadcast %47 : vector<1x32xf32> to vector<16x32xf32>
    %49 = arith.addf %46, %48 : vector<16x32xf32>
    %50 = arith.negf %49 : vector<16x32xf32>
    %51 = math.exp %50 : vector<16x32xf32>
    %cst_49 = arith.constant 1.000000e+00 : f32
    %52 = vector.broadcast %cst_49 : f32 to vector<16x32xf32>
    %53 = arith.addf %52, %51 : vector<16x32xf32>
    %54 = arith.divf %52, %53 : vector<16x32xf32>
    %55 = arith.mulf %49, %54 : vector<16x32xf32>
    %c1_50 = arith.constant 1 : index
    %c0_51 = arith.constant 0 : index
    %56 = vector.load %arg17[%c1_50, %c0_51] : memref<18x32xf32, #tpu.memory_space<vmem>>, vector<16x32xf32>
    tpu.vector_store %arg17[%c1_50, %c0_51], %55 {strides = array<i32>} : memref<18x32xf32, #tpu.memory_space<vmem>>, vector<16x32xf32>,
    %cst_52 = arith.constant 0.000000e+00 : f32
    %57 = vector.broadcast %cst_52 : f32 to vector<16x8xf32>
    %c0_53 = arith.constant 0 : index
    %c0_54 = arith.constant 0 : index
    %58 = vector.load %arg17[%c0_53, %c0_54] : memref<18x32xf32, #tpu.memory_space<vmem>>, vector<16x32xf32>
    %c0_55 = arith.constant 0 : index
    %c0_56 = arith.constant 0 : index
    %c0_57 = arith.constant 0 : index
    %59 = vector.load %arg6[%c0_55, %c0_56, %c0_57] : memref<3x32x8xf32, #tpu.memory_space<vmem>>, vector<1x32x8xf32>
    %60 = vector.shape_cast %59 : vector<1x32x8xf32> to vector<32x8xf32>
    %cst_58 = arith.constant dense<0.000000e+00> : vector<16x8xf32>
    %61 = tpu.matmul %58, %60, %cst_58 {dimension_numbers = #tpu.dot_dimension_numbers<[1], [0], [0], [1], [0, 0, 1, 1], [], []>} : vector<16x32xf32>, vector<32x8xf32>, vector<16x8xf32> -> vector<16x8xf32>
    %62 = arith.addf %57, %61 : vector<16x8xf32>
    %c1_59 = arith.constant 1 : index
    %c0_60 = arith.constant 0 : index
    %63 = vector.load %arg17[%c1_59, %c0_60] : memref<18x32xf32, #tpu.memory_space<vmem>>, vector<16x32xf32>
    %c1_61 = arith.constant 1 : index
    %c0_62 = arith.constant 0 : index
    %c0_63 = arith.constant 0 : index
    %64 = vector.load %arg6[%c1_61, %c0_62, %c0_63] : memref<3x32x8xf32, #tpu.memory_space<vmem>>, vector<1x32x8xf32>
    %65 = vector.shape_cast %64 : vector<1x32x8xf32> to vector<32x8xf32>
    %cst_64 = arith.constant dense<0.000000e+00> : vector<16x8xf32>
    %66 = tpu.matmul %63, %65, %cst_64 {dimension_numbers = #tpu.dot_dimension_numbers<[1], [0], [0], [1], [0, 0, 1, 1], [], []>} : vector<16x32xf32>, vector<32x8xf32>, vector<16x8xf32> -> vector<16x8xf32>
    %67 = arith.addf %62, %66 : vector<16x8xf32>
    %c2_65 = arith.constant 2 : index
    %c0_66 = arith.constant 0 : index
    %68 = vector.load %arg17[%c2_65, %c0_66] : memref<18x32xf32, #tpu.memory_space<vmem>>, vector<16x32xf32>
    %c2_67 = arith.constant 2 : index
    %c0_68 = arith.constant 0 : index
    %c0_69 = arith.constant 0 : index
    %69 = vector.load %arg6[%c2_67, %c0_68, %c0_69] : memref<3x32x8xf32, #tpu.memory_space<vmem>>, vector<1x32x8xf32>
    %70 = vector.shape_cast %69 : vector<1x32x8xf32> to vector<32x8xf32>
    %cst_70 = arith.constant dense<0.000000e+00> : vector<16x8xf32>
    %71 = tpu.matmul %68, %70, %cst_70 {dimension_numbers = #tpu.dot_dimension_numbers<[1], [0], [0], [1], [0, 0, 1, 1], [], []>} : vector<16x32xf32>, vector<32x8xf32>, vector<16x8xf32> -> vector<16x8xf32>
    %72 = arith.addf %67, %71 : vector<16x8xf32>
    %c0_71 = arith.constant 0 : index
    %c0_72 = arith.constant 0 : index
    %73 = vector.load %arg7[%c0_71, %c0_72] : memref<1x8xf32, #tpu.memory_space<vmem>>, vector<1x8xf32>
    %74 = vector.broadcast %73 : vector<1x8xf32> to vector<16x8xf32>
    %75 = arith.addf %72, %74 : vector<16x8xf32>
    %c0_73 = arith.constant 0 : index
    %c0_74 = arith.constant 0 : index
    %76 = vector.load %arg8[%c0_73, %c0_74] : memref<8x8xf32, #tpu.memory_space<vmem>>, vector<8x8xf32>
    %cst_75 = arith.constant dense<0.000000e+00> : vector<16x8xf32>
    %77 = tpu.matmul %75, %76, %cst_75 {dimension_numbers = #tpu.dot_dimension_numbers<[1], [0], [0], [1], [0, 0, 1, 1], [], []>} : vector<16x8xf32>, vector<8x8xf32>, vector<16x8xf32> -> vector<16x8xf32>
    %c0_76 = arith.constant 0 : index
    %c0_77 = arith.constant 0 : index
    %78 = vector.load %arg9[%c0_76, %c0_77] : memref<1x8xf32, #tpu.memory_space<vmem>>, vector<1x8xf32>
    %79 = vector.broadcast %78 : vector<1x8xf32> to vector<16x8xf32>
    %80 = arith.addf %77, %79 : vector<16x8xf32>
    %c1_78 = arith.constant 1 : index
    %c0_79 = arith.constant 0 : index
    %81 = vector.load %arg17[%c1_78, %c0_79] : memref<18x32xf32, #tpu.memory_space<vmem>>, vector<16x8xf32>
    tpu.vector_store %arg17[%c1_78, %c0_79], %80 {strides = array<i32>} : memref<18x32xf32, #tpu.memory_space<vmem>>, vector<16x8xf32>,
    %cst_80 = arith.constant 0.000000e+00 : f32
    %82 = vector.broadcast %cst_80 : f32 to vector<16x32xf32>
    %c0_81 = arith.constant 0 : index
    %c0_82 = arith.constant 0 : index
    %83 = vector.load %arg17[%c0_81, %c0_82] : memref<18x32xf32, #tpu.memory_space<vmem>>, vector<16x8xf32>
    %c0_83 = arith.constant 0 : index
    %c0_84 = arith.constant 0 : index
    %c0_85 = arith.constant 0 : index
    %84 = vector.load %arg10[%c0_83, %c0_84, %c0_85] : memref<3x8x32xf32, #tpu.memory_space<vmem>>, vector<1x8x32xf32>
    %85 = vector.shape_cast %84 : vector<1x8x32xf32> to vector<8x32xf32>
    %cst_86 = arith.constant dense<0.000000e+00> : vector<16x32xf32>
    %86 = tpu.matmul %83, %85, %cst_86 {dimension_numbers = #tpu.dot_dimension_numbers<[1], [0], [0], [1], [0, 0, 1, 1], [], []>} : vector<16x8xf32>, vector<8x32xf32>, vector<16x32xf32> -> vector<16x32xf32>
    %87 = arith.addf %82, %86 : vector<16x32xf32>
    %c1_87 = arith.constant 1 : index
    %c0_88 = arith.constant 0 : index
    %88 = vector.load %arg17[%c1_87, %c0_88] : memref<18x32xf32, #tpu.memory_space<vmem>>, vector<16x8xf32>
    %c1_89 = arith.constant 1 : index
    %c0_90 = arith.constant 0 : index
    %c0_91 = arith.constant 0 : index
    %89 = vector.load %arg10[%c1_89, %c0_90, %c0_91] : memref<3x8x32xf32, #tpu.memory_space<vmem>>, vector<1x8x32xf32>
    %90 = vector.shape_cast %89 : vector<1x8x32xf32> to vector<8x32xf32>
    %cst_92 = arith.constant dense<0.000000e+00> : vector<16x32xf32>
    %91 = tpu.matmul %88, %90, %cst_92 {dimension_numbers = #tpu.dot_dimension_numbers<[1], [0], [0], [1], [0, 0, 1, 1], [], []>} : vector<16x8xf32>, vector<8x32xf32>, vector<16x32xf32> -> vector<16x32xf32>
    %92 = arith.addf %87, %91 : vector<16x32xf32>
    %c2_93 = arith.constant 2 : index
    %c0_94 = arith.constant 0 : index
    %93 = vector.load %arg17[%c2_93, %c0_94] : memref<18x32xf32, #tpu.memory_space<vmem>>, vector<16x8xf32>
    %c2_95 = arith.constant 2 : index
    %c0_96 = arith.constant 0 : index
    %c0_97 = arith.constant 0 : index
    %94 = vector.load %arg10[%c2_95, %c0_96, %c0_97] : memref<3x8x32xf32, #tpu.memory_space<vmem>>, vector<1x8x32xf32>
    %95 = vector.shape_cast %94 : vector<1x8x32xf32> to vector<8x32xf32>
    %cst_98 = arith.constant dense<0.000000e+00> : vector<16x32xf32>
    %96 = tpu.matmul %93, %95, %cst_98 {dimension_numbers = #tpu.dot_dimension_numbers<[1], [0], [0], [1], [0, 0, 1, 1], [], []>} : vector<16x8xf32>, vector<8x32xf32>, vector<16x32xf32> -> vector<16x32xf32>
    %97 = arith.addf %92, %96 : vector<16x32xf32>
    %c0_99 = arith.constant 0 : index
    %c0_100 = arith.constant 0 : index
    %98 = vector.load %arg11[%c0_99, %c0_100] : memref<1x32xf32, #tpu.memory_space<vmem>>, vector<1x32xf32>
    %99 = vector.broadcast %98 : vector<1x32xf32> to vector<16x32xf32>
    %100 = arith.addf %97, %99 : vector<16x32xf32>
    %101 = arith.negf %100 : vector<16x32xf32>
    %102 = math.exp %101 : vector<16x32xf32>
    %cst_101 = arith.constant 1.000000e+00 : f32
    %103 = vector.broadcast %cst_101 : f32 to vector<16x32xf32>
    %104 = arith.addf %103, %102 : vector<16x32xf32>
    %105 = arith.divf %103, %104 : vector<16x32xf32>
    %106 = arith.mulf %100, %105 : vector<16x32xf32>
    %c1_102 = arith.constant 1 : index
    %c0_103 = arith.constant 0 : index
    %107 = vector.load %arg17[%c1_102, %c0_103] : memref<18x32xf32, #tpu.memory_space<vmem>>, vector<16x32xf32>
    tpu.vector_store %arg17[%c1_102, %c0_103], %106 {strides = array<i32>} : memref<18x32xf32, #tpu.memory_space<vmem>>, vector<16x32xf32>,
    %cst_104 = arith.constant 0.000000e+00 : f32
    %108 = vector.broadcast %cst_104 : f32 to vector<16x32xf32>
    %c0_105 = arith.constant 0 : index
    %c0_106 = arith.constant 0 : index
    %109 = vector.load %arg17[%c0_105, %c0_106] : memref<18x32xf32, #tpu.memory_space<vmem>>, vector<16x32xf32>
    %c0_107 = arith.constant 0 : index
    %c0_108 = arith.constant 0 : index
    %c0_109 = arith.constant 0 : index
    %110 = vector.load %arg12[%c0_107, %c0_108, %c0_109] : memref<3x32x32xf32, #tpu.memory_space<vmem>>, vector<1x32x32xf32>
    %111 = vector.shape_cast %110 : vector<1x32x32xf32> to vector<32x32xf32>
    %cst_110 = arith.constant dense<0.000000e+00> : vector<16x32xf32>
    %112 = tpu.matmul %109, %111, %cst_110 {dimension_numbers = #tpu.dot_dimension_numbers<[1], [0], [0], [1], [0, 0, 1, 1], [], []>} : vector<16x32xf32>, vector<32x32xf32>, vector<16x32xf32> -> vector<16x32xf32>
    %113 = arith.addf %108, %112 : vector<16x32xf32>
    %c1_111 = arith.constant 1 : index
    %c0_112 = arith.constant 0 : index
    %114 = vector.load %arg17[%c1_111, %c0_112] : memref<18x32xf32, #tpu.memory_space<vmem>>, vector<16x32xf32>
    %c1_113 = arith.constant 1 : index
    %c0_114 = arith.constant 0 : index
    %c0_115 = arith.constant 0 : index
    %115 = vector.load %arg12[%c1_113, %c0_114, %c0_115] : memref<3x32x32xf32, #tpu.memory_space<vmem>>, vector<1x32x32xf32>
    %116 = vector.shape_cast %115 : vector<1x32x32xf32> to vector<32x32xf32>
    %cst_116 = arith.constant dense<0.000000e+00> : vector<16x32xf32>
    %117 = tpu.matmul %114, %116, %cst_116 {dimension_numbers = #tpu.dot_dimension_numbers<[1], [0], [0], [1], [0, 0, 1, 1], [], []>} : vector<16x32xf32>, vector<32x32xf32>, vector<16x32xf32> -> vector<16x32xf32>
    %118 = arith.addf %113, %117 : vector<16x32xf32>
    %c2_117 = arith.constant 2 : index
    %c0_118 = arith.constant 0 : index
    %119 = vector.load %arg17[%c2_117, %c0_118] : memref<18x32xf32, #tpu.memory_space<vmem>>, vector<16x32xf32>
    %c2_119 = arith.constant 2 : index
    %c0_120 = arith.constant 0 : index
    %c0_121 = arith.constant 0 : index
    %120 = vector.load %arg12[%c2_119, %c0_120, %c0_121] : memref<3x32x32xf32, #tpu.memory_space<vmem>>, vector<1x32x32xf32>
    %121 = vector.shape_cast %120 : vector<1x32x32xf32> to vector<32x32xf32>
    %cst_122 = arith.constant dense<0.000000e+00> : vector<16x32xf32>
    %122 = tpu.matmul %119, %121, %cst_122 {dimension_numbers = #tpu.dot_dimension_numbers<[1], [0], [0], [1], [0, 0, 1, 1], [], []>} : vector<16x32xf32>, vector<32x32xf32>, vector<16x32xf32> -> vector<16x32xf32>
    %123 = arith.addf %118, %122 : vector<16x32xf32>
    %c0_123 = arith.constant 0 : index
    %c0_124 = arith.constant 0 : index
    %124 = vector.load %arg13[%c0_123, %c0_124] : memref<1x32xf32, #tpu.memory_space<vmem>>, vector<1x32xf32>
    %125 = vector.broadcast %124 : vector<1x32xf32> to vector<16x32xf32>
    %126 = arith.addf %123, %125 : vector<16x32xf32>
    %127 = arith.negf %126 : vector<16x32xf32>
    %128 = math.exp %127 : vector<16x32xf32>
    %cst_125 = arith.constant 1.000000e+00 : f32
    %129 = vector.broadcast %cst_125 : f32 to vector<16x32xf32>
    %130 = arith.addf %129, %128 : vector<16x32xf32>
    %131 = arith.divf %129, %130 : vector<16x32xf32>
    %132 = arith.mulf %126, %131 : vector<16x32xf32>
    %c1_126 = arith.constant 1 : index
    %c0_127 = arith.constant 0 : index
    %133 = vector.load %arg17[%c1_126, %c0_127] : memref<18x32xf32, #tpu.memory_space<vmem>>, vector<16x32xf32>
    tpu.vector_store %arg17[%c1_126, %c0_127], %132 {strides = array<i32>} : memref<18x32xf32, #tpu.memory_space<vmem>>, vector<16x32xf32>,
    %cst_128 = arith.constant 0.000000e+00 : f32
    %134 = vector.broadcast %cst_128 : f32 to vector<16x4xf32>
    %c0_129 = arith.constant 0 : index
    %c0_130 = arith.constant 0 : index
    %135 = vector.load %arg17[%c0_129, %c0_130] : memref<18x32xf32, #tpu.memory_space<vmem>>, vector<16x32xf32>
    %c0_131 = arith.constant 0 : index
    %c0_132 = arith.constant 0 : index
    %c0_133 = arith.constant 0 : index
    %136 = vector.load %arg14[%c0_131, %c0_132, %c0_133] : memref<3x32x4xf32, #tpu.memory_space<vmem>>, vector<1x32x4xf32>
    %137 = vector.shape_cast %136 : vector<1x32x4xf32> to vector<32x4xf32>
    %cst_134 = arith.constant dense<0.000000e+00> : vector<16x4xf32>
    %138 = tpu.matmul %135, %137, %cst_134 {dimension_numbers = #tpu.dot_dimension_numbers<[1], [0], [0], [1], [0, 0, 1, 1], [], []>} : vector<16x32xf32>, vector<32x4xf32>, vector<16x4xf32> -> vector<16x4xf32>
    %139 = arith.addf %134, %138 : vector<16x4xf32>
    %c1_135 = arith.constant 1 : index
    %c0_136 = arith.constant 0 : index
    %140 = vector.load %arg17[%c1_135, %c0_136] : memref<18x32xf32, #tpu.memory_space<vmem>>, vector<16x32xf32>
    %c1_137 = arith.constant 1 : index
    %c0_138 = arith.constant 0 : index
    %c0_139 = arith.constant 0 : index
    %141 = vector.load %arg14[%c1_137, %c0_138, %c0_139] : memref<3x32x4xf32, #tpu.memory_space<vmem>>, vector<1x32x4xf32>
    %142 = vector.shape_cast %141 : vector<1x32x4xf32> to vector<32x4xf32>
    %cst_140 = arith.constant dense<0.000000e+00> : vector<16x4xf32>
    %143 = tpu.matmul %140, %142, %cst_140 {dimension_numbers = #tpu.dot_dimension_numbers<[1], [0], [0], [1], [0, 0, 1, 1], [], []>} : vector<16x32xf32>, vector<32x4xf32>, vector<16x4xf32> -> vector<16x4xf32>
    %144 = arith.addf %139, %143 : vector<16x4xf32>
    %c2_141 = arith.constant 2 : index
    %c0_142 = arith.constant 0 : index
    %145 = vector.load %arg17[%c2_141, %c0_142] : memref<18x32xf32, #tpu.memory_space<vmem>>, vector<16x32xf32>
    %c2_143 = arith.constant 2 : index
    %c0_144 = arith.constant 0 : index
    %c0_145 = arith.constant 0 : index
    %146 = vector.load %arg14[%c2_143, %c0_144, %c0_145] : memref<3x32x4xf32, #tpu.memory_space<vmem>>, vector<1x32x4xf32>
    %147 = vector.shape_cast %146 : vector<1x32x4xf32> to vector<32x4xf32>
    %cst_146 = arith.constant dense<0.000000e+00> : vector<16x4xf32>
    %148 = tpu.matmul %145, %147, %cst_146 {dimension_numbers = #tpu.dot_dimension_numbers<[1], [0], [0], [1], [0, 0, 1, 1], [], []>} : vector<16x32xf32>, vector<32x4xf32>, vector<16x4xf32> -> vector<16x4xf32>
    %149 = arith.addf %144, %148 : vector<16x4xf32>
    %c0_147 = arith.constant 0 : index
    %c0_148 = arith.constant 0 : index
    %150 = vector.load %arg15[%c0_147, %c0_148] : memref<1x4xf32, #tpu.memory_space<vmem>>, vector<1x4xf32>
    %151 = vector.broadcast %150 : vector<1x4xf32> to vector<16x4xf32>
    %152 = arith.addf %149, %151 : vector<16x4xf32>
    %c0_149 = arith.constant 0 : index
    %c0_150 = arith.constant 0 : index
    %c0_151 = arith.constant 0 : index
    %153 = vector.load %arg16[%c0_149, %c0_150, %c0_151] : memref<1x16x4xf32, #tpu.memory_space<vmem>>, vector<1x16x4xf32>
    %154 = vector.shape_cast %153 : vector<1x16x4xf32> to vector<16x4xf32>
    %155 = vector.shape_cast %152 : vector<16x4xf32> to vector<1x16x4xf32>
    tpu.vector_store %arg16[%c0_149, %c0_150, %c0_151], %155 {strides = array<i32>} : memref<1x16x4xf32, #tpu.memory_space<vmem>>, vector<1x16x4xf32>,
    return
  }
  func.func @transform_0(%arg0: i32) -> (i32, i32, i32) {
    %c0_i32 = arith.constant 0 : i32
    %c0_i32_0 = arith.constant 0 : i32
    %c0_i32_1 = arith.constant 0 : i32
    return %arg0, %c0_i32, %c0_i32_0 : i32, i32, i32
  }
  func.func @transform_1(%arg0: i32) -> (i32, i32, i32) {
    %c0_i32 = arith.constant 0 : i32
    %c0_i32_0 = arith.constant 0 : i32
    %c0_i32_1 = arith.constant 0 : i32
    %c0_i32_2 = arith.constant 0 : i32
    return %c0_i32, %c0_i32_0, %c0_i32_1 : i32, i32, i32
  }
  func.func @transform_2(%arg0: i32) -> (i32, i32) {
    %c0_i32 = arith.constant 0 : i32
    %c0_i32_0 = arith.constant 0 : i32
    %c0_i32_1 = arith.constant 0 : i32
    return %c0_i32, %c0_i32_0 : i32, i32
  }
  func.func @transform_3(%arg0: i32) -> (i32, i32, i32) {
    %c0_i32 = arith.constant 0 : i32
    %c0_i32_0 = arith.constant 0 : i32
    %c0_i32_1 = arith.constant 0 : i32
    %c0_i32_2 = arith.constant 0 : i32
    return %c0_i32, %c0_i32_0, %c0_i32_1 : i32, i32, i32
  }
  func.func @transform_4(%arg0: i32) -> (i32, i32) {
    %c0_i32 = arith.constant 0 : i32
    %c0_i32_0 = arith.constant 0 : i32
    %c0_i32_1 = arith.constant 0 : i32
    return %c0_i32, %c0_i32_0 : i32, i32
  }
  func.func @transform_5(%arg0: i32) -> (i32, i32, i32) {
    %c0_i32 = arith.constant 0 : i32
    %c0_i32_0 = arith.constant 0 : i32
    %c0_i32_1 = arith.constant 0 : i32
    %c0_i32_2 = arith.constant 0 : i32
    return %c0_i32, %c0_i32_0, %c0_i32_1 : i32, i32, i32
  }
  func.func @transform_6(%arg0: i32) -> (i32, i32) {
    %c0_i32 = arith.constant 0 : i32
    %c0_i32_0 = arith.constant 0 : i32
    %c0_i32_1 = arith.constant 0 : i32
    return %c0_i32, %c0_i32_0 : i32, i32
  }
  func.func @transform_7(%arg0: i32) -> (i32, i32) {
    %c0_i32 = arith.constant 0 : i32
    %c0_i32_0 = arith.constant 0 : i32
    %c0_i32_1 = arith.constant 0 : i32
    return %c0_i32, %c0_i32_0 : i32, i32
  }
  func.func @transform_8(%arg0: i32) -> (i32, i32) {
    %c0_i32 = arith.constant 0 : i32
    %c0_i32_0 = arith.constant 0 : i32
    %c0_i32_1 = arith.constant 0 : i32
    return %c0_i32, %c0_i32_0 : i32, i32
  }
  func.func @transform_9(%arg0: i32) -> (i32, i32, i32) {
    %c0_i32 = arith.constant 0 : i32
    %c0_i32_0 = arith.constant 0 : i32
    %c0_i32_1 = arith.constant 0 : i32
    %c0_i32_2 = arith.constant 0 : i32
    return %c0_i32, %c0_i32_0, %c0_i32_1 : i32, i32, i32
  }
  func.func @transform_10(%arg0: i32) -> (i32, i32) {
    %c0_i32 = arith.constant 0 : i32
    %c0_i32_0 = arith.constant 0 : i32
    %c0_i32_1 = arith.constant 0 : i32
    return %c0_i32, %c0_i32_0 : i32, i32
  }
  func.func @transform_11(%arg0: i32) -> (i32, i32, i32) {
    %c0_i32 = arith.constant 0 : i32
    %c0_i32_0 = arith.constant 0 : i32
    %c0_i32_1 = arith.constant 0 : i32
    %c0_i32_2 = arith.constant 0 : i32
    return %c0_i32, %c0_i32_0, %c0_i32_1 : i32, i32, i32
  }
  func.func @transform_12(%arg0: i32) -> (i32, i32) {
    %c0_i32 = arith.constant 0 : i32
    %c0_i32_0 = arith.constant 0 : i32
    %c0_i32_1 = arith.constant 0 : i32
    return %c0_i32, %c0_i32_0 : i32, i32
  }
  func.func @transform_13(%arg0: i32) -> (i32, i32, i32) {
    %c0_i32 = arith.constant 0 : i32
    %c0_i32_0 = arith.constant 0 : i32
    %c0_i32_1 = arith.constant 0 : i32
    %c0_i32_2 = arith.constant 0 : i32
    return %c0_i32, %c0_i32_0, %c0_i32_1 : i32, i32, i32
  }
  func.func @transform_14(%arg0: i32) -> (i32, i32) {
    %c0_i32 = arith.constant 0 : i32
    %c0_i32_0 = arith.constant 0 : i32
    %c0_i32_1 = arith.constant 0 : i32
    return %c0_i32, %c0_i32_0 : i32, i32
  }
  func.func @transform_15(%arg0: i32) -> (i32, i32, i32) {
    %c0_i32 = arith.constant 0 : i32
    %c0_i32_0 = arith.constant 0 : i32
    %c0_i32_1 = arith.constant 0 : i32
    return %arg0, %c0_i32, %c0_i32_0 : i32, i32, i32
  }
}

</mosaic_0001>

<llo_original>
// kernel: a_call__.1
$region0: #{a_call__.1}
  #allocation0 [shape = 'u32[]', space=smem, size = 0x4, offset = 0x4, fixed_abs, tag = 'smem constant byte address 0x4 - core index']
  #allocation1 [shape = 'u32[72,128]{1,0:T(1,128)}', space=vmem, size = 0x9000, scoped, tag = 'internal scratch']
  #allocation2 [shape = 'f32[18,32]{1,0:T(8,128)}', space=vmem, size = 0x3000, scoped, tag = 'scratch operand']
  %s0 = inlined_call_operand.vmem [shape: f32[2,16,4], index: 0, kind: input, shape index: {}]
  %s1 = inlined_call_operand.vmem [shape: f32[3,4,32], index: 1, kind: input, shape index: {}]
  %s2 = inlined_call_operand.vmem [shape: f32[1,32], index: 2, kind: input, shape index: {}]
  %s3 = inlined_call_operand.hbm [shape: f32[3,32,32], index: 3, kind: input, shape index: {}]
  %s4 = inlined_call_operand.vmem [shape: f32[1,32], index: 4, kind: input, shape index: {}]
  %s5 = inlined_call_operand.hbm [shape: f32[3,32,8], index: 5, kind: input, shape index: {}]
  %s6 = inlined_call_operand.vmem [shape: f32[1,8], index: 6, kind: input, shape index: {}]
  %s7 = inlined_call_operand.vmem [shape: f32[8,8], index: 7, kind: input, shape index: {}]
  %s8 = inlined_call_operand.hbm [shape: f32[1,8], index: 8, kind: input, shape index: {}]
  %s9 = inlined_call_operand.vmem [shape: f32[3,8,32], index: 9, kind: input, shape index: {}]
  %s10 = inlined_call_operand.hbm [shape: f32[1,32], index: 10, kind: input, shape index: {}]
  %s11 = inlined_call_operand.hbm [shape: f32[3,32,32], index: 11, kind: input, shape index: {}]
  %s12 = inlined_call_operand.hbm [shape: f32[1,32], index: 12, kind: input, shape index: {}]
  %s13 = inlined_call_operand.hbm [shape: f32[3,32,4], index: 13, kind: input, shape index: {}]
  %s14 = inlined_call_operand.hbm [shape: f32[1,4], index: 14, kind: input, shape index: {}]
  %s15 = inlined_call_operand.vmem [shape: f32[2,16,4], index: 15, kind: output, shape index: {}]
  %s16 = sld [smem:[#allocation0]]
  $region125: #{a_call__.1} parent=0
    _
  %s18 = ssub.s32 1, %s16
  %s19 = scalar_select 0, %s18, %s16
  $region1: #{a_call__.1} parent=0
    #allocation3 [shape = 'u8[49152]{0}', space=vmem, size = 0xc000, scoped, tag = 'input window, operand 3, single buffered']
    #allocation4 [shape = 's32[2]{0}', space=sflag, size = 0x8, scoped, tag = 'scoped memory for a_call__.1']
    #allocation5 [shape = 'u8[49152]{0}', space=vmem, size = 0xc000, scoped, tag = 'input window, operand 5, single buffered']
    #allocation6 [shape = 's32[1]{0}', space=sflag, size = 0x4, scoped, tag = 'scoped memory for a_call__.1']
    #allocation7 [shape = 'u8[512]{0}', space=vmem, size = 0x400, scoped, tag = 'input window, operand 8, single buffered']
    #allocation8 [shape = 'u8[512]{0}', space=vmem, size = 0x400, scoped, tag = 'input window, operand 10, single buffered']
    #allocation9 [shape = 's32[1]{0}', space=sflag, size = 0x4, scoped, tag = 'scoped memory for a_call__.1']
    #allocation10 [shape = 'u8[49152]{0}', space=vmem, size = 0xc000, scoped, tag = 'input window, operand 11, single buffered']
    #allocation11 [shape = 'u8[512]{0}', space=vmem, size = 0x400, scoped, tag = 'input window, operand 12, single buffered']
    #allocation12 [shape = 's32[1]{0}', space=sflag, size = 0x4, scoped, tag = 'scoped memory for a_call__.1']
    #allocation13 [shape = 'u8[49152]{0}', space=vmem, size = 0xc000, scoped, tag = 'input window, operand 13, single buffered']
    #allocation14 [shape = 'u8[512]{0}', space=vmem, size = 0x400, scoped, tag = 'input window, operand 14, single buffered']
    #allocation15 [shape = 's32[1]{0}', space=sflag, size = 0x4, scoped, tag = 'scoped memory for a_call__.1']
    %20 = vsyncpa [#allocation4], 0
    %21 = vsyncpa [#allocation6], 0
    %22 = vsyncpa [#allocation9], 0
    %23 = vsyncpa [#allocation12], 0
    %24 = vsyncpa [#allocation15], 0
    loop: start=0, step=1, limit=4
    $region2: #{a_call__.1} parent=1 // loop_pre_header
      _
    $region3: #{a_call__.1} parent=1 // loop_header
      %s26 = sphi 0, %s30
      %p27 = scmp.ge.s32.totalorder %s26, 4
      %s36 = sphi 0, %s38
      %s39 = sphi 0, %s36
      %s40 = sphi 0, %s39
      %s56 = sphi 0, %s40
      %s60 = sphi 0, %s60
      %s62 = sphi 0, %s60
      %s63 = sphi 0, %s62
      %s77 = sphi 0, %s63
      %s81 = sphi 0, %s81
      %s83 = sphi 0, %s81
      %s84 = sphi 0, %s83
      %s98 = sphi 0, %s84
      %s102 = sphi 0, %s102
      %s104 = sphi 0, %s102
      %s105 = sphi 0, %s104
      %s119 = sphi 0, %s105
      %s123 = sphi 0, %s123
      %s125 = sphi 0, %s123
      %s126 = sphi 0, %s125
      %s140 = sphi 0, %s126
      %s144 = sphi 0, %s144
      %s146 = sphi 0, %s144
      %s147 = sphi 0, %s146
      %s161 = sphi 0, %s147
      %s165 = sphi 0, %s165
      %s167 = sphi 0, %s165
      %s168 = sphi 0, %s167
      %s182 = sphi 0, %s168
      %s186 = sphi 0, %s186
      %s188 = sphi 0, %s186
      %s189 = sphi 0, %s188
      %s203 = sphi 0, %s189
      %s207 = sphi 0, %s207
      %s209 = sphi 0, %s207
      %s210 = sphi 0, %s209
      %s224 = sphi 0, %s210
      %s228 = sphi 0, %s228
      %s230 = sphi 0, %s228
      %s231 = sphi 0, %s230
      %s245 = sphi 0, %s231
      %s249 = sphi 0, %s249
      %s251 = sphi 0, %s249
      %s252 = sphi 0, %s251
      %s266 = sphi 0, %s252
      %s270 = sphi 0, %s270
      %s272 = sphi 0, %s270
      %s273 = sphi 0, %s272
      %s287 = sphi 0, %s273
      %s291 = sphi 0, %s291
      %s293 = sphi 0, %s291
      %s294 = sphi 0, %s293
      %s308 = sphi 0, %s294
      %s312 = sphi 0, %s312
      %s314 = sphi 0, %s312
      %s315 = sphi 0, %s314
      %s329 = sphi 0, %s315
      %s333 = sphi 0, %s333
      %s335 = sphi 0, %s333
      %s336 = sphi 0, %s335
      %s350 = sphi 0, %s336
      %s356 = sphi 0, %s358
      %s359 = sphi 0, %s356
      %s360 = sphi 0, %s359
      %s376 = sphi 0, %s360
    $region4: #{a_call__.1} parent=1 // loop_header_branch
      %29 = sbr.rel (%p27) target = $region8
    $region5: #{a_call__.1} parent=1 // loop_body
      %s31 = ssub.s32 %s26, 1
      %s32 = ssub.s32 %s26, 2
      %s33 = sadd.s32 %s26, 1
      %s34 = ssub.s32 %s26, %s33
      %p35 = scmp.eq.s32.totalorder %s34, 0
      %s37 = sadd.s32 %s36, 1
      %s38 = scalar_select %p35, %s36, %s37
      %p41 = pneg %p35
      %p42 = scmp.eq.s32.totalorder %s26, 1
      %p43 = por %p41, %p42
      %p44 = scmp.ne.s32.totalorder %s36, %s39
      %p45 = scmp.eq.s32.totalorder %s26, 0
      %p46 = por %p44, %p45
      %p47 = scmp.ne.s32.totalorder %s36, %s39
      %p48 = scmp.eq.s32.totalorder %s31, 1
      %p49 = por %p47, %p48
      %p50 = scmp.ne.s32.totalorder %s39, %s40
      %p51 = scmp.eq.s32.totalorder %s31, 0
      %p52 = por %p50, %p51
      %p53 = scmp.ne.s32.totalorder %s39, %s40
      %p54 = scmp.eq.s32.totalorder %s32, 1
      %p55 = por %p53, %p54
      %p57 = scmp.ne.s32.totalorder %s40, %s56
      %p58 = scmp.eq.s32.totalorder %s32, 0
      %p59 = por %p57, %p58
      %s61 = sadd.s32 %s60, 1
      %p64 = scmp.eq.s32.totalorder %s26, 1
      %p65 = scmp.ne.s32.totalorder %s60, %s62
      %p66 = scmp.eq.s32.totalorder %s26, 0
      %p67 = por %p65, %p66
      %p68 = scmp.ne.s32.totalorder %s60, %s62
      %p69 = scmp.eq.s32.totalorder %s31, 1
      %p70 = por %p68, %p69
      %p71 = scmp.ne.s32.totalorder %s62, %s63
      %p72 = scmp.eq.s32.totalorder %s31, 0
      %p73 = por %p71, %p72
      %p74 = scmp.ne.s32.totalorder %s62, %s63
      %p75 = scmp.eq.s32.totalorder %s32, 1
      %p76 = por %p74, %p75
      %p78 = scmp.ne.s32.totalorder %s63, %s77
      %p79 = scmp.eq.s32.totalorder %s32, 0
      %p80 = por %p78, %p79
      %s82 = sadd.s32 %s81, 1
      %p85 = scmp.eq.s32.totalorder %s26, 1
      %p86 = scmp.ne.s32.totalorder %s81, %s83
      %p87 = scmp.eq.s32.totalorder %s26, 0
      %p88 = por %p86, %p87
      %p89 = scmp.ne.s32.totalorder %s81, %s83
      %p90 = scmp.eq.s32.totalorder %s31, 1
      %p91 = por %p89, %p90
      %p92 = scmp.ne.s32.totalorder %s83, %s84
      %p93 = scmp.eq.s32.totalorder %s31, 0
      %p94 = por %p92, %p93
      %p95 = scmp.ne.s32.totalorder %s83, %s84
      %p96 = scmp.eq.s32.totalorder %s32, 1
      %p97 = por %p95, %p96
      %p99 = scmp.ne.s32.totalorder %s84, %s98
      %p100 = scmp.eq.s32.totalorder %s32, 0
      %p101 = por %p99, %p100
      %s103 = sadd.s32 %s102, 1
      %p106 = scmp.eq.s32.totalorder %s26, 1
      %p107 = scmp.ne.s32.totalorder %s102, %s104
      %p108 = scmp.eq.s32.totalorder %s26, 0
      %p109 = por %p107, %p108
      %p110 = scmp.ne.s32.totalorder %s102, %s104
      %p111 = scmp.eq.s32.totalorder %s31, 1
      %p112 = por %p110, %p111
      %p113 = scmp.ne.s32.totalorder %s104, %s105
      %p114 = scmp.eq.s32.totalorder %s31, 0
      %p115 = por %p113, %p114
      %p116 = scmp.ne.s32.totalorder %s104, %s105
      %p117 = scmp.eq.s32.totalorder %s32, 1
      %p118 = por %p116, %p117
      %p120 = scmp.ne.s32.totalorder %s105, %s119
      %p121 = scmp.eq.s32.totalorder %s32, 0
      %p122 = por %p120, %p121
      %s124 = sadd.s32 %s123, 1
      %p127 = scmp.eq.s32.totalorder %s26, 1
      %p128 = scmp.ne.s32.totalorder %s123, %s125
      %p129 = scmp.eq.s32.totalorder %s26, 0
      %p130 = por %p128, %p129
      %p131 = scmp.ne.s32.totalorder %s123, %s125
      %p132 = scmp.eq.s32.totalorder %s31, 1
      %p133 = por %p131, %p132
      %p134 = scmp.ne.s32.totalorder %s125, %s126
      %p135 = scmp.eq.s32.totalorder %s31, 0
      %p136 = por %p134, %p135
      %p137 = scmp.ne.s32.totalorder %s125, %s126
      %p138 = scmp.eq.s32.totalorder %s32, 1
      %p139 = por %p137, %p138
      %p141 = scmp.ne.s32.totalorder %s126, %s140
      %p142 = scmp.eq.s32.totalorder %s32, 0
      %p143 = por %p141, %p142
      %s145 = sadd.s32 %s144, 1
      %p148 = scmp.eq.s32.totalorder %s26, 1
      %p149 = scmp.ne.s32.totalorder %s144, %s146
      %p150 = scmp.eq.s32.totalorder %s26, 0
      %p151 = por %p149, %p150
      %p152 = scmp.ne.s32.totalorder %s144, %s146
      %p153 = scmp.eq.s32.totalorder %s31, 1
      %p154 = por %p152, %p153
      %p155 = scmp.ne.s32.totalorder %s146, %s147
      %p156 = scmp.eq.s32.totalorder %s31, 0
      %p157 = por %p155, %p156
      %p158 = scmp.ne.s32.totalorder %s146, %s147
      %p159 = scmp.eq.s32.totalorder %s32, 1
      %p160 = por %p158, %p159
      %p162 = scmp.ne.s32.totalorder %s147, %s161
      %p163 = scmp.eq.s32.totalorder %s32, 0
      %p164 = por %p162, %p163
      %s166 = sadd.s32 %s165, 1
      %p169 = scmp.eq.s32.totalorder %s26, 1
      %p170 = scmp.ne.s32.totalorder %s165, %s167
      %p171 = scmp.eq.s32.totalorder %s26, 0
      %p172 = por %p170, %p171
      %p173 = scmp.ne.s32.totalorder %s165, %s167
      %p174 = scmp.eq.s32.totalorder %s31, 1
      %p175 = por %p173, %p174
      %p176 = scmp.ne.s32.totalorder %s167, %s168
      %p177 = scmp.eq.s32.totalorder %s31, 0
      %p178 = por %p176, %p177
      %p179 = scmp.ne.s32.totalorder %s167, %s168
      %p180 = scmp.eq.s32.totalorder %s32, 1
      %p181 = por %p179, %p180
      %p183 = scmp.ne.s32.totalorder %s168, %s182
      %p184 = scmp.eq.s32.totalorder %s32, 0
      %p185 = por %p183, %p184
      %s187 = sadd.s32 %s186, 1
      %p190 = scmp.eq.s32.totalorder %s26, 1
      %p191 = scmp.ne.s32.totalorder %s186, %s188
      %p192 = scmp.eq.s32.totalorder %s26, 0
      %p193 = por %p191, %p192
      %p194 = scmp.ne.s32.totalorder %s186, %s188
      %p195 = scmp.eq.s32.totalorder %s31, 1
      %p196 = por %p194, %p195
      %p197 = scmp.ne.s32.totalorder %s188, %s189
      %p198 = scmp.eq.s32.totalorder %s31, 0
      %p199 = por %p197, %p198
      %p200 = scmp.ne.s32.totalorder %s188, %s189
      %p201 = scmp.eq.s32.totalorder %s32, 1
      %p202 = por %p200, %p201
      %p204 = scmp.ne.s32.totalorder %s189, %s203
      %p205 = scmp.eq.s32.totalorder %s32, 0
      %p206 = por %p204, %p205
      %s208 = sadd.s32 %s207, 1
      %p211 = scmp.eq.s32.totalorder %s26, 1
      %p212 = scmp.ne.s32.totalorder %s207, %s209
      %p213 = scmp.eq.s32.totalorder %s26, 0
      %p214 = por %p212, %p213
      %p215 = scmp.ne.s32.totalorder %s207, %s209
      %p216 = scmp.eq.s32.totalorder %s31, 1
      %p217 = por %p215, %p216
      %p218 = scmp.ne.s32.totalorder %s209, %s210
      %p219 = scmp.eq.s32.totalorder %s31, 0
      %p220 = por %p218, %p219
      %p221 = scmp.ne.s32.totalorder %s209, %s210
      %p222 = scmp.eq.s32.totalorder %s32, 1
      %p223 = por %p221, %p222
      %p225 = scmp.ne.s32.totalorder %s210, %s224
      %p226 = scmp.eq.s32.totalorder %s32, 0
      %p227 = por %p225, %p226
      %s229 = sadd.s32 %s228, 1
      %p232 = scmp.eq.s32.totalorder %s26, 1
      %p233 = scmp.ne.s32.totalorder %s228, %s230
      %p234 = scmp.eq.s32.totalorder %s26, 0
      %p235 = por %p233, %p234
      %p236 = scmp.ne.s32.totalorder %s228, %s230
      %p237 = scmp.eq.s32.totalorder %s31, 1
      %p238 = por %p236, %p237
      %p239 = scmp.ne.s32.totalorder %s230, %s231
      %p240 = scmp.eq.s32.totalorder %s31, 0
      %p241 = por %p239, %p240
      %p242 = scmp.ne.s32.totalorder %s230, %s231
      %p243 = scmp.eq.s32.totalorder %s32, 1
      %p244 = por %p242, %p243
      %p246 = scmp.ne.s32.totalorder %s231, %s245
      %p247 = scmp.eq.s32.totalorder %s32, 0
      %p248 = por %p246, %p247
      %s250 = sadd.s32 %s249, 1
      %p253 = scmp.eq.s32.totalorder %s26, 1
      %p254 = scmp.ne.s32.totalorder %s249, %s251
      %p255 = scmp.eq.s32.totalorder %s26, 0
      %p256 = por %p254, %p255
      %p257 = scmp.ne.s32.totalorder %s249, %s251
      %p258 = scmp.eq.s32.totalorder %s31, 1
      %p259 = por %p257, %p258
      %p260 = scmp.ne.s32.totalorder %s251, %s252
      %p261 = scmp.eq.s32.totalorder %s31, 0
      %p262 = por %p260, %p261
      %p263 = scmp.ne.s32.totalorder %s251, %s252
      %p264 = scmp.eq.s32.totalorder %s32, 1
      %p265 = por %p263, %p264
      %p267 = scmp.ne.s32.totalorder %s252, %s266
      %p268 = scmp.eq.s32.totalorder %s32, 0
      %p269 = por %p267, %p268
      %s271 = sadd.s32 %s270, 1
      %p274 = scmp.eq.s32.totalorder %s26, 1
      %p275 = scmp.ne.s32.totalorder %s270, %s272
      %p276 = scmp.eq.s32.totalorder %s26, 0
      %p277 = por %p275, %p276
      %p278 = scmp.ne.s32.totalorder %s270, %s272
      %p279 = scmp.eq.s32.totalorder %s31, 1
      %p280 = por %p278, %p279
      %p281 = scmp.ne.s32.totalorder %s272, %s273
      %p282 = scmp.eq.s32.totalorder %s31, 0
      %p283 = por %p281, %p282
      %p284 = scmp.ne.s32.totalorder %s272, %s273
      %p285 = scmp.eq.s32.totalorder %s32, 1
      %p286 = por %p284, %p285
      %p288 = scmp.ne.s32.totalorder %s273, %s287
      %p289 = scmp.eq.s32.totalorder %s32, 0
      %p290 = por %p288, %p289
      %s292 = sadd.s32 %s291, 1
      %p295 = scmp.eq.s32.totalorder %s26, 1
      %p296 = scmp.ne.s32.totalorder %s291, %s293
      %p297 = scmp.eq.s32.totalorder %s26, 0
      %p298 = por %p296, %p297
      %p299 = scmp.ne.s32.totalorder %s291, %s293
      %p300 = scmp.eq.s32.totalorder %s31, 1
      %p301 = por %p299, %p300
      %p302 = scmp.ne.s32.totalorder %s293, %s294
      %p303 = scmp.eq.s32.totalorder %s31, 0
      %p304 = por %p302, %p303
      %p305 = scmp.ne.s32.totalorder %s293, %s294
      %p306 = scmp.eq.s32.totalorder %s32, 1
      %p307 = por %p305, %p306
      %p309 = scmp.ne.s32.totalorder %s294, %s308
      %p310 = scmp.eq.s32.totalorder %s32, 0
      %p311 = por %p309, %p310
      %s313 = sadd.s32 %s312, 1
      %p316 = scmp.eq.s32.totalorder %s26, 1
      %p317 = scmp.ne.s32.totalorder %s312, %s314
      %p318 = scmp.eq.s32.totalorder %s26, 0
      %p319 = por %p317, %p318
      %p320 = scmp.ne.s32.totalorder %s312, %s314
      %p321 = scmp.eq.s32.totalorder %s31, 1
      %p322 = por %p320, %p321
      %p323 = scmp.ne.s32.totalorder %s314, %s315
      %p324 = scmp.eq.s32.totalorder %s31, 0
      %p325 = por %p323, %p324
      %p326 = scmp.ne.s32.totalorder %s314, %s315
      %p327 = scmp.eq.s32.totalorder %s32, 1
      %p328 = por %p326, %p327
      %p330 = scmp.ne.s32.totalorder %s315, %s329
      %p331 = scmp.eq.s32.totalorder %s32, 0
      %p332 = por %p330, %p331
      %s334 = sadd.s32 %s333, 1
      %p337 = scmp.eq.s32.totalorder %s26, 1
      %p338 = scmp.ne.s32.totalorder %s333, %s335
      %p339 = scmp.eq.s32.totalorder %s26, 0
      %p340 = por %p338, %p339
      %p341 = scmp.ne.s32.totalorder %s333, %s335
      %p342 = scmp.eq.s32.totalorder %s31, 1
      %p343 = por %p341, %p342
      %p344 = scmp.ne.s32.totalorder %s335, %s336
      %p345 = scmp.eq.s32.totalorder %s31, 0
      %p346 = por %p344, %p345
      %p347 = scmp.ne.s32.totalorder %s335, %s336
      %p348 = scmp.eq.s32.totalorder %s32, 1
      %p349 = por %p347, %p348
      %p351 = scmp.ne.s32.totalorder %s336, %s350
      %p352 = scmp.eq.s32.totalorder %s32, 0
      %p353 = por %p351, %p352
      %s354 = ssub.s32 %s26, %s33
      %p355 = scmp.eq.s32.totalorder %s354, 0
      %s357 = sadd.s32 %s356, 1
      %s358 = scalar_select %p355, %s356, %s357
      %p361 = pneg %p355
      %p362 = scmp.eq.s32.totalorder %s26, 1
      %p363 = por %p361, %p362
      %p364 = scmp.ne.s32.totalorder %s356, %s359
      %p365 = scmp.eq.s32.totalorder %s26, 0
      %p366 = por %p364, %p365
      %p367 = scmp.ne.s32.totalorder %s356, %s359
      %p368 = scmp.eq.s32.totalorder %s31, 1
      %p369 = por %p367, %p368
      %p370 = scmp.ne.s32.totalorder %s359, %s360
      %p371 = scmp.eq.s32.totalorder %s31, 0
      %p372 = por %p370, %p371
      %p373 = scmp.ne.s32.totalorder %s359, %s360
      %p374 = scmp.eq.s32.totalorder %s32, 1
      %p375 = por %p373, %p374
      %p377 = scmp.ne.s32.totalorder %s360, %s376
      %p378 = scmp.eq.s32.totalorder %s32, 0
      %p379 = por %p377, %p378
      %p380 = scmp.le.s32.totalorder 1, %s26
      %p381 = scmp.lt.s32.totalorder %s26, 3
      %p382 = pnand %p380, %p381
      %p383 = pneg %p382
      // Predicated region
      $region9: #{a_call__.1} parent=5 // pred_check
        _
      $region10: #{a_call__.1} parent=5 // pred_check_branch
        %385 = sbr.rel (%p382) target = $region12
      $region11: #{a_call__.1} parent=5 // pred_region
        %s386 = ssub.s32 %s26, 1
        // Predicated region
        $region13: #{a_call__.1} parent=11 // pred_check
          %p387 = pneg %p73
        $region14: #{a_call__.1} parent=11 // pred_check_branch
          %389 = sbr.rel (%p387) target = $region16
        $region15: #{a_call__.1} parent=11 // pred_region
          _
        $region16: #{a_call__.1} parent=11 // pred_fallthru
          _
        // Predicated region
        $region17: #{a_call__.1} parent=11 // pred_check
          %p390 = pneg %p94
        $region18: #{a_call__.1} parent=11 // pred_check_branch
          %392 = sbr.rel (%p390) target = $region20
        $region19: #{a_call__.1} parent=11 // pred_region
          _
        $region20: #{a_call__.1} parent=11 // pred_fallthru
          _
        // Predicated region
        $region21: #{a_call__.1} parent=11 // pred_check
          %p393 = pneg %p115
        $region22: #{a_call__.1} parent=11 // pred_check_branch
          %395 = sbr.rel (%p393) target = $region24
        $region23: #{a_call__.1} parent=11 // pred_region
          %397 = vsyncadd [#allocation4], 0
          %s398 = sshll.u32 %s3, 4
          %s399 = int_to_ptr.hbm [resolvable:$true] %s398
          %s400 = sshll.u32 [#allocation3], 4
          %s401 = int_to_ptr.vmem [resolvable:$true] %s400
          %406 = dma.hbm_to_vmem [thread:$0]  %s399, 1536, %s401, [#allocation4], 128, 128, 8
        $region24: #{a_call__.1} parent=11 // pred_fallthru
          _
        // Predicated region
        $region25: #{a_call__.1} parent=11 // pred_check
          %p407 = pneg %p136
        $region26: #{a_call__.1} parent=11 // pred_check_branch
          %409 = sbr.rel (%p407) target = $region28
        $region27: #{a_call__.1} parent=11 // pred_region
          _
        $region28: #{a_call__.1} parent=11 // pred_fallthru
          _
        // Predicated region
        $region29: #{a_call__.1} parent=11 // pred_check
          %p410 = pneg %p157
        $region30: #{a_call__.1} parent=11 // pred_check_branch
          %412 = sbr.rel (%p410) target = $region32
        $region31: #{a_call__.1} parent=11 // pred_region
          %414 = vsyncadd [#allocation6], 0
          %s415 = sshll.u32 %s5, 4
          %s416 = int_to_ptr.hbm [resolvable:$true] %s415
          %s417 = sshll.u32 [#allocation5], 4
          %s418 = int_to_ptr.vmem [resolvable:$true] %s417
          %423 = dma.hbm_to_vmem [thread:$0]  %s416, 1536, %s418, [#allocation6], 128, 128, 8
        $region32: #{a_call__.1} parent=11 // pred_fallthru
          _
        // Predicated region
        $region33: #{a_call__.1} parent=11 // pred_check
          %p424 = pneg %p178
        $region34: #{a_call__.1} parent=11 // pred_check_branch
          %426 = sbr.rel (%p424) target = $region36
        $region35: #{a_call__.1} parent=11 // pred_region
          _
        $region36: #{a_call__.1} parent=11 // pred_fallthru
          _
        // Predicated region
        $region37: #{a_call__.1} parent=11 // pred_check
          %p427 = pneg %p199
        $region38: #{a_call__.1} parent=11 // pred_check_branch
          %429 = sbr.rel (%p427) target = $region40
        $region39: #{a_call__.1} parent=11 // pred_region
          _
        $region40: #{a_call__.1} parent=11 // pred_fallthru
          _
        // Predicated region
        $region41: #{a_call__.1} parent=11 // pred_check
          %p430 = pneg %p220
        $region42: #{a_call__.1} parent=11 // pred_check_branch
          %432 = sbr.rel (%p430) target = $region44
        $region43: #{a_call__.1} parent=11 // pred_region
          %434 = vsyncadd [#allocation6], 0
          %s436 = sshll.u32 %s8, 4
          %s437 = int_to_ptr.hbm [resolvable:$true] %s436
          %s438 = sshll.u32 [#allocation7], 4
          %s439 = int_to_ptr.vmem [resolvable:$true] %s438
          %441 = dma.hbm_to_vmem [thread:$0]  %s437, 16, %s439, [#allocation6]
        $region44: #{a_call__.1} parent=11 // pred_fallthru
          _
        // Predicated region
        $region45: #{a_call__.1} parent=11 // pred_check
          %p442 = pneg %p241
        $region46: #{a_call__.1} parent=11 // pred_check_branch
          %444 = sbr.rel (%p442) target = $region48
        $region47: #{a_call__.1} parent=11 // pred_region
          _
        $region48: #{a_call__.1} parent=11 // pred_fallthru
          _
        // Predicated region
        $region49: #{a_call__.1} parent=11 // pred_check
          %p445 = pneg %p262
        $region50: #{a_call__.1} parent=11 // pred_check_branch
          %447 = sbr.rel (%p445) target = $region52
        $region51: #{a_call__.1} parent=11 // pred_region
          %449 = vsyncadd [#allocation9], 0
          %s451 = sshll.u32 %s10, 4
          %s452 = int_to_ptr.hbm [resolvable:$true] %s451
          %s453 = sshll.u32 [#allocation8], 4
          %s454 = int_to_ptr.vmem [resolvable:$true] %s453
          %456 = dma.hbm_to_vmem [thread:$0]  %s452, 16, %s454, [#allocation9]
        $region52: #{a_call__.1} parent=11 // pred_fallthru
          _
        // Predicated region
        $region53: #{a_call__.1} parent=11 // pred_check
          %p457 = pneg %p283
        $region54: #{a_call__.1} parent=11 // pred_check_branch
          %459 = sbr.rel (%p457) target = $region56
        $region55: #{a_call__.1} parent=11 // pred_region
          %461 = vsyncadd [#allocation9], 0
          %s462 = sshll.u32 %s11, 4
          %s463 = int_to_ptr.hbm [resolvable:$true] %s462
          %s464 = sshll.u32 [#allocation10], 4
          %s465 = int_to_ptr.vmem [resolvable:$true] %s464
          %470 = dma.hbm_to_vmem [thread:$0]  %s463, 1536, %s465, [#allocation9], 128, 128, 8
        $region56: #{a_call__.1} parent=11 // pred_fallthru
          _
        // Predicated region
        $region57: #{a_call__.1} parent=11 // pred_check
          %p471 = pneg %p304
        $region58: #{a_call__.1} parent=11 // pred_check_branch
          %473 = sbr.rel (%p471) target = $region60
        $region59: #{a_call__.1} parent=11 // pred_region
          %475 = vsyncadd [#allocation12], 0
          %s477 = sshll.u32 %s12, 4
          %s478 = int_to_ptr.hbm [resolvable:$true] %s477
          %s479 = sshll.u32 [#allocation11], 4
          %s480 = int_to_ptr.vmem [resolvable:$true] %s479
          %482 = dma.hbm_to_vmem [thread:$0]  %s478, 16, %s480, [#allocation12]
        $region60: #{a_call__.1} parent=11 // pred_fallthru
          _
        // Predicated region
        $region61: #{a_call__.1} parent=11 // pred_check
          %p483 = pneg %p325
        $region62: #{a_call__.1} parent=11 // pred_check_branch
          %485 = sbr.rel (%p483) target = $region64
        $region63: #{a_call__.1} parent=11 // pred_region
          %487 = vsyncadd [#allocation12], 0
          %s488 = sshll.u32 %s13, 4
          %s489 = int_to_ptr.hbm [resolvable:$true] %s488
          %s490 = sshll.u32 [#allocation13], 4
          %s491 = int_to_ptr.vmem [resolvable:$true] %s490
          %496 = dma.hbm_to_vmem [thread:$0]  %s489, 1536, %s491, [#allocation12], 128, 128, 8
        $region64: #{a_call__.1} parent=11 // pred_fallthru
          _
        // Predicated region
        $region65: #{a_call__.1} parent=11 // pred_check
          %p497 = pneg %p346
        $region66: #{a_call__.1} parent=11 // pred_check_branch
          %499 = sbr.rel (%p497) target = $region68
        $region67: #{a_call__.1} parent=11 // pred_region
          %501 = vsyncadd [#allocation15], 0
          %s503 = sshll.u32 %s14, 4
          %s504 = int_to_ptr.hbm [resolvable:$true] %s503
          %s505 = sshll.u32 [#allocation14], 4
          %s506 = int_to_ptr.vmem [resolvable:$true] %s505
          %508 = dma.hbm_to_vmem [thread:$0]  %s504, 16, %s506, [#allocation15]
        $region68: #{a_call__.1} parent=11 // pred_fallthru
          _
      $region12: #{a_call__.1} parent=5 // pred_fallthru
        _
      %p509 = scmp.lt.s32.totalorder %s26, 2
      // Predicated region
      $region69: #{a_call__.1} parent=5 // pred_check
        %p510 = pneg %p509
      $region70: #{a_call__.1} parent=5 // pred_check_branch
        %512 = sbr.rel (%p510) target = $region72
      $region71: #{a_call__.1} parent=5 // pred_region
        // Predicated region
        $region73: #{a_call__.1} parent=71 // pred_check
          %p513 = pneg %p46
        $region74: #{a_call__.1} parent=71 // pred_check_branch
          %515 = sbr.rel (%p513) target = $region76
        $region75: #{a_call__.1} parent=71 // pred_region
          %p516 = scmp.lt.s32.totalorder %s26, 1
          %s517 = scalar_select %p516, %s26, 1
          %s518 = smul.addr %s517, 2
          %s519 = smul.addr %s518, 8
          %s520 = scalar_lea.vmem %s0, %s519
        $region76: #{a_call__.1} parent=71 // pred_fallthru
          _
      $region72: #{a_call__.1} parent=5 // pred_fallthru
        _
      %p521 = scmp.le.s32.totalorder 1, %s26
      %p522 = scmp.lt.s32.totalorder %s26, 3
      %p523 = pnand %p521, %p522
      %p524 = pneg %p523
      // Predicated region
      $region77: #{a_call__.1} parent=5 // pred_check
        _
      $region78: #{a_call__.1} parent=5 // pred_check_branch
        %526 = sbr.rel (%p523) target = $region80
      $region79: #{a_call__.1} parent=5 // pred_region
        %s527 = ssub.s32 %s26, 1
        // Predicated region
        $region81: #{a_call__.1} parent=79 // pred_check
          %p528 = pneg %p115
        $region82: #{a_call__.1} parent=79 // pred_check_branch
          %530 = sbr.rel (%p528) target = $region84
        $region83: #{a_call__.1} parent=79 // pred_region
          %532 = dma.done [#allocation4], 1536
        $region84: #{a_call__.1} parent=79 // pred_fallthru
          _
        // Predicated region
        $region85: #{a_call__.1} parent=79 // pred_check
          %p533 = pneg %p157
        $region86: #{a_call__.1} parent=79 // pred_check_branch
          %535 = sbr.rel (%p533) target = $region88
        $region87: #{a_call__.1} parent=79 // pred_region
          %537 = dma.done [#allocation6], 1536
        $region88: #{a_call__.1} parent=79 // pred_fallthru
          _
        // Predicated region
        $region89: #{a_call__.1} parent=79 // pred_check
          %p538 = pneg %p220
        $region90: #{a_call__.1} parent=79 // pred_check_branch
          %540 = sbr.rel (%p538) target = $region92
        $region91: #{a_call__.1} parent=79 // pred_region
          %542 = dma.done [#allocation6], 16
        $region92: #{a_call__.1} parent=79 // pred_fallthru
          _
        // Predicated region
        $region93: #{a_call__.1} parent=79 // pred_check
          %p543 = pneg %p262
        $region94: #{a_call__.1} parent=79 // pred_check_branch
          %545 = sbr.rel (%p543) target = $region96
        $region95: #{a_call__.1} parent=79 // pred_region
          %547 = dma.done [#allocation9], 16
        $region96: #{a_call__.1} parent=79 // pred_fallthru
          _
        // Predicated region
        $region97: #{a_call__.1} parent=79 // pred_check
          %p548 = pneg %p283
        $region98: #{a_call__.1} parent=79 // pred_check_branch
          %550 = sbr.rel (%p548) target = $region100
        $region99: #{a_call__.1} parent=79 // pred_region
          %552 = dma.done [#allocation9], 1536
        $region100: #{a_call__.1} parent=79 // pred_fallthru
          _
        // Predicated region
        $region101: #{a_call__.1} parent=79 // pred_check
          %p553 = pneg %p304
        $region102: #{a_call__.1} parent=79 // pred_check_branch
          %555 = sbr.rel (%p553) target = $region104
        $region103: #{a_call__.1} parent=79 // pred_region
          %557 = dma.done [#allocation12], 16
        $region104: #{a_call__.1} parent=79 // pred_fallthru
          _
        // Predicated region
        $region105: #{a_call__.1} parent=79 // pred_check
          %p558 = pneg %p325
        $region106: #{a_call__.1} parent=79 // pred_check_branch
          %560 = sbr.rel (%p558) target = $region108
        $region107: #{a_call__.1} parent=79 // pred_region
          %562 = dma.done [#allocation12], 1536
        $region108: #{a_call__.1} parent=79 // pred_fallthru
          _
        // Predicated region
        $region109: #{a_call__.1} parent=79 // pred_check
          %p563 = pneg %p346
        $region110: #{a_call__.1} parent=79 // pred_check_branch
          %565 = sbr.rel (%p563) target = $region112
        $region111: #{a_call__.1} parent=79 // pred_region
          %567 = dma.done [#allocation15], 16
        $region112: #{a_call__.1} parent=79 // pred_fallthru
          _
        %p568 = scmp.lt.s32.totalorder %s31, 1
        %s569 = scalar_select %p568, %s31, 1
        %s570 = smul.addr %s569, 2
        %s571 = smul.addr %s570, 8
        %s572 = scalar_lea.vmem %s0, %s571
        %p573 = pneg %p52
        %p574 = pneg %p49
        %p575 = pneg %p73
        %p576 = pneg %p70
        %p577 = pneg %p94
        %p578 = pneg %p91
        %p579 = pneg %p115
        %p580 = pneg %p112
        %p581 = pneg %p136
        %p582 = pneg %p133
        %p583 = pneg %p157
        %p584 = pneg %p154
        %p585 = pneg %p178
        %p586 = pneg %p175
        %p587 = pneg %p199
        %p588 = pneg %p196
        %p589 = pneg %p220
        %p590 = pneg %p217
        %p591 = pneg %p241
        %p592 = pneg %p238
        %p593 = pneg %p262
        %p594 = pneg %p259
        %p595 = pneg %p283
        %p596 = pneg %p280
        %p597 = pneg %p304
        %p598 = pneg %p301
        %p599 = pneg %p325
        %p600 = pneg %p322
        %p601 = pneg %p346
        %p602 = pneg %p343
        %p603 = pneg %p372
        %p604 = pneg %p369
        %p605 = scmp.lt.s32.totalorder %s31, 1
        %s606 = scalar_select %p605, %s31, 1
        %s607 = smul.addr %s606, 2
        %s608 = smul.addr %s607, 8
        %s609 = scalar_lea.vmem %s15, %s608
        %p610 = scmp.lt.s32.totalorder %s31, 1
        %s611 = scalar_select %p610, %s31, 1
        %s612 = smul.addr %s611, 2
        %s613 = smul.addr %s612, 8
        %s614 = scalar_lea.vmem %s0, %s613
        %p615 = scmp.lt.s32.totalorder %s31, 1
        %s616 = scalar_select %p615, %s31, 1
        %s617 = smul.addr %s616, 2
        %s618 = smul.addr %s617, 8
        %s619 = scalar_lea.vmem %s15, %s618
        %vm620 = vcmask 261120
        %621 = vst.msk [vmem:[#allocation2] sm:$0xff] %vm620, 0.0
        %622 = vst.msk [vmem:[#allocation2 + $0x8] sm:$0xff] %vm620, 0.0
        %vm623 = vcmask 254976
        %624 = vst.msk [vmem:[#allocation2 + $0x10] sm:$0x3] %vm623, 0.0
        %v625 = vld [vmem:[%s614] sm:$0xff]
        %v626 = vld [vmem:[%s614 + $0x8] sm:$0xff]
        %vm627 = vcmask 31744
        %628 = vst.msk [vmem:[#allocation2 + $0x1] sm:$0xff] %vm627, %v625
        %629 = vst.msk [vmem:[#allocation2 + $0x9] sm:$0xff] %vm627, %v626
        %v630 = vld [vmem:[#allocation2] sm:$0xff]
        %v631 = vld [vmem:[#allocation2 + $0x8] sm:$0xff]
        %v632 = vld [vmem:[%s1] sm:$0xf]
        %v633 = vld [vmem:[#allocation2 + $0x1] sm:$0xff]
        %v634 = vld [vmem:[#allocation2 + $0x9] sm:$0xff]
        %s635 = scalar_lea.vmem %s1, 4
        %v636 = vld [vmem:[%s635] sm:$0xf]
        %v638 = vsel %vm627, %v633, 0
        %v641 = vsel %vm627, %v634, 0
        %vm643 = vcmask 1043456
        %v645 = vsel %vm643, %v636, 0
        %647 = vmatpush.msra.mxu0 0.0
        %648 = vmatpush.msra.mxu0 0.0
        %649 = vmatpush.msra.mxu0 0.0
        %650 = vmatpush.msra.mxu0 0.0
        %651 = vmatpush.msra.mxu0 0.0
        %652 = vmatpush.msra.mxu0 0.0
        %653 = vmatpush.msra.mxu0 0.0
        %654 = vmatpush.msra.mxu0 0.0
        %655 = vmatpush.msra.mxu0 0.0
        %656 = vmatpush.msra.mxu0 0.0
        %657 = vmatpush.msra.mxu0 0.0
        %658 = vmatpush.msra.mxu0 0.0
        %659 = vmatpush.msra.mxu0 0.0
        %660 = vmatpush.msra.mxu0 0.0
        %661 = vmatpush.msra.mxu0 0.0
        %662 = vmatpush.msra.mxu0 %v645
        %663 = vmatmul.f32.gmra.mxu0 %v638
        %v664 = vpop.f32.mrf.mxu0
        %v665 = vadd.f32 0.0, %v664
        %666 = vmatmul.f32.gmra.mxu0 %v641
        %v667 = vpop.f32.mrf.mxu0
        %v668 = vadd.f32 0.0, %v667
        %669 = vdwg.mxu0
        %v671 = vsel %vm627, %v630, 0
        %v674 = vsel %vm627, %v631, 0
        %v677 = vsel %vm643, %v632, 0
        %679 = vmatpush.msra.mxu0 0.0
        %680 = vmatpush.msra.mxu0 0.0
        %681 = vmatpush.msra.mxu0 0.0
        %682 = vmatpush.msra.mxu0 0.0
        %683 = vmatpush.msra.mxu0 0.0
        %684 = vmatpush.msra.mxu0 0.0
        %685 = vmatpush.msra.mxu0 0.0
        %686 = vmatpush.msra.mxu0 0.0
        %687 = vmatpush.msra.mxu0 0.0
        %688 = vmatpush.msra.mxu0 0.0
        %689 = vmatpush.msra.mxu0 0.0
        %690 = vmatpush.msra.mxu0 0.0
        %691 = vmatpush.msra.mxu0 0.0
        %692 = vmatpush.msra.mxu0 0.0
        %693 = vmatpush.msra.mxu0 0.0
        %694 = vmatpush.msra.mxu0 %v677
        %695 = vmatmul.f32.gmra.mxu0 %v671
        %v696 = vpop.f32.mrf.mxu0
        %v697 = vadd.f32 %v665, %v696
        %698 = vmatmul.f32.gmra.mxu0 %v674
        %v699 = vpop.f32.mrf.mxu0
        %v700 = vadd.f32 %v668, %v699
        %701 = vdwg.mxu0
        %v702 = vld [vmem:[#allocation2 + $0x2] sm:$0xff]
        %v703 = vld [vmem:[#allocation2 + $0xa] sm:$0xff]
        %s704 = scalar_lea.vmem %s1, 8
        %v705 = vld [vmem:[%s704] sm:$0xf]
        %v707 = vsel %vm627, %v702, 0
        %v710 = vsel %vm627, %v703, 0
        %v713 = vsel %vm643, %v705, 0
        %715 = vmatpush.msra.mxu0 0.0
        %716 = vmatpush.msra.mxu0 0.0
        %717 = vmatpush.msra.mxu0 0.0
        %718 = vmatpush.msra.mxu0 0.0
        %719 = vmatpush.msra.mxu0 0.0
        %720 = vmatpush.msra.mxu0 0.0
        %721 = vmatpush.msra.mxu0 0.0
        %722 = vmatpush.msra.mxu0 0.0
        %723 = vmatpush.msra.mxu0 0.0
        %724 = vmatpush.msra.mxu0 0.0
        %725 = vmatpush.msra.mxu0 0.0
        %726 = vmatpush.msra.mxu0 0.0
        %727 = vmatpush.msra.mxu0 0.0
        %728 = vmatpush.msra.mxu0 0.0
        %729 = vmatpush.msra.mxu0 0.0
        %730 = vmatpush.msra.mxu0 %v713
        %731 = vmatmul.f32.gmra.mxu0 %v707
        %v732 = vpop.f32.mrf.mxu0
        %v733 = vadd.f32 0.0, %v732
        %734 = vmatmul.f32.gmra.mxu0 %v710
        %v735 = vpop.f32.mrf.mxu0
        %v736 = vadd.f32 0.0, %v735
        %737 = vdwg.mxu0
        %v738 = vadd.f32 %v697, %v733
        %v739 = vadd.f32 %v700, %v736
        %v740 = vld [vmem:[%s2] sm:$0x1]
        %v742 = vperm.slane %v740, 0
        %v744 = vadd.f32 %v738, %v742
        %v745 = vadd.f32 %v739, %v742
        %v746 = vxor.u32 %v744, 2147483648
        %v747 = vxor.u32 %v745, 2147483648
        %v748 = vmul.f32 %v746, 1.442695
        %v749 = vpow.pop %v748
        %v750 = vmul.f32 %v747, 1.442695
        %v751 = vpow.pop %v750
        %v752 = vadd.f32 %v749, 1.0
        %v753 = vadd.f32 %v751, 1.0
        %v754 = vrcp.pop %v752
        %v755 = vmul.f32 %v752, %v754
        %v756 = vsub.f32 1.0, %v755
        %v757 = vmul.f32 %v754, %v756
        %v758 = vadd.f32 %v754, %v757
        %vm759 = vweird.f32 %v752
        %vm760 = vweird.f32 %v754
        %vm761 = vmor %vm759, %vm760
        %v762 = vsel %vm761, %v754, %v758
        %v763 = vand.u32 2147483647, %v752
        %vm764 = vcmp.eq.f32.partialorder %v763, 8.507059e+37
        %v765 = vand.u32 %v752, 2147483648
        %v766 = vor.u32 1.1754944e-38, %v765
        %v767 = vsel %vm764, %v766, %v762
        %v768 = vmul.f32 1.0, %v767
        %v769 = vrcp.pop %v753
        %v770 = vmul.f32 %v753, %v769
        %v771 = vsub.f32 1.0, %v770
        %v772 = vmul.f32 %v769, %v771
        %v773 = vadd.f32 %v769, %v772
        %vm774 = vweird.f32 %v753
        %vm775 = vweird.f32 %v769
        %vm776 = vmor %vm774, %vm775
        %v777 = vsel %vm776, %v769, %v773
        %v778 = vand.u32 2147483647, %v753
        %vm779 = vcmp.eq.f32.partialorder %v778, 8.507059e+37
        %v780 = vand.u32 %v753, 2147483648
        %v781 = vor.u32 1.1754944e-38, %v780
        %v782 = vsel %vm779, %v781, %v777
        %v783 = vmul.f32 1.0, %v782
        %v784 = vmul.f32 %v744, %v768
        %v785 = vmul.f32 %v745, %v783
        %786 = vst.msk [vmem:[#allocation2 + $0x1] sm:$0xff] %vm620, %v784
        %787 = vst.msk [vmem:[#allocation2 + $0x9] sm:$0xff] %vm620, %v785
        %v788 = vld [vmem:[#allocation2] sm:$0xff]
        %v789 = vld [vmem:[#allocation2 + $0x8] sm:$0xff]
        %v790 = vld [vmem:[#allocation3] sm:$0xff]
        %v791 = vld [vmem:[#allocation3 + $0x8] sm:$0xff]
        %v792 = vld [vmem:[#allocation3 + $0x10] sm:$0xff]
        %v793 = vld [vmem:[#allocation3 + $0x18] sm:$0xff]
        %v794 = vld [vmem:[#allocation2 + $0x1] sm:$0xff]
        %v795 = vld [vmem:[#allocation2 + $0x9] sm:$0xff]
        %s796 = scalar_lea.vmem [#allocation3], 32
        %v797 = vld [vmem:[%s796] sm:$0xff]
        %v798 = vld [vmem:[%s796 + $0x8] sm:$0xff]
        %v799 = vld [vmem:[%s796 + $0x10] sm:$0xff]
        %v800 = vld [vmem:[%s796 + $0x18] sm:$0xff]
        %v802 = vsel %vm620, %v794, 0
        %v805 = vsel %vm620, %v795, 0
        %807 = vmatpush.msra.mxu0 0.0
        %808 = vmatpush.msra.mxu0 0.0
        %809 = vmatpush.msra.mxu0 0.0
        %810 = vmatpush.msra.mxu0 0.0
        %811 = vmatpush.msra.mxu0 0.0
        %812 = vmatpush.msra.mxu0 0.0
        %813 = vmatpush.msra.mxu0 0.0
        %814 = vmatpush.msra.mxu0 0.0
        %815 = vmatpush.msra.mxu0 0.0
        %816 = vmatpush.msra.mxu0 0.0
        %817 = vmatpush.msra.mxu0 0.0
        %818 = vmatpush.msra.mxu0 0.0
        %819 = vmatpush.msra.mxu0 %v800
        %820 = vmatpush.msra.mxu0 %v799
        %821 = vmatpush.msra.mxu0 %v798
        %822 = vmatpush.msra.mxu0 %v797
        %823 = vmatmul.f32.gmra.mxu0 %v802
        %v824 = vpop.f32.mrf.mxu0
        %v825 = vadd.f32 0.0, %v824
        %826 = vmatmul.f32.gmra.mxu0 %v805
        %v827 = vpop.f32.mrf.mxu0
        %v828 = vadd.f32 0.0, %v827
        %829 = vdwg.mxu0
        %v831 = vsel %vm620, %v788, 0
        %v834 = vsel %vm620, %v789, 0
        %836 = vmatpush.msra.mxu0 0.0
        %837 = vmatpush.msra.mxu0 0.0
        %838 = vmatpush.msra.mxu0 0.0
        %839 = vmatpush.msra.mxu0 0.0
        %840 = vmatpush.msra.mxu0 0.0
        %841 = vmatpush.msra.mxu0 0.0
        %842 = vmatpush.msra.mxu0 0.0
        %843 = vmatpush.msra.mxu0 0.0
        %844 = vmatpush.msra.mxu0 0.0
        %845 = vmatpush.msra.mxu0 0.0
        %846 = vmatpush.msra.mxu0 0.0
        %847 = vmatpush.msra.mxu0 0.0
        %848 = vmatpush.msra.mxu0 %v793
        %849 = vmatpush.msra.mxu0 %v792
        %850 = vmatpush.msra.mxu0 %v791
        %851 = vmatpush.msra.mxu0 %v790
        %852 = vmatmul.f32.gmra.mxu0 %v831
        %v853 = vpop.f32.mrf.mxu0
        %v854 = vadd.f32 %v825, %v853
        %855 = vmatmul.f32.gmra.mxu0 %v834
        %v856 = vpop.f32.mrf.mxu0
        %v857 = vadd.f32 %v828, %v856
        %858 = vdwg.mxu0
        %v859 = vld [vmem:[#allocation2 + $0x2] sm:$0xff]
        %v860 = vld [vmem:[#allocation2 + $0xa] sm:$0xff]
        %s861 = scalar_lea.vmem [#allocation3], 64
        %v862 = vld [vmem:[%s861] sm:$0xff]
        %v863 = vld [vmem:[%s861 + $0x8] sm:$0xff]
        %v864 = vld [vmem:[%s861 + $0x10] sm:$0xff]
        %v865 = vld [vmem:[%s861 + $0x18] sm:$0xff]
        %v867 = vsel %vm620, %v859, 0
        %v870 = vsel %vm620, %v860, 0
        %872 = vmatpush.msra.mxu0 0.0
        %873 = vmatpush.msra.mxu0 0.0
        %874 = vmatpush.msra.mxu0 0.0
        %875 = vmatpush.msra.mxu0 0.0
        %876 = vmatpush.msra.mxu0 0.0
        %877 = vmatpush.msra.mxu0 0.0
        %878 = vmatpush.msra.mxu0 0.0
        %879 = vmatpush.msra.mxu0 0.0
        %880 = vmatpush.msra.mxu0 0.0
        %881 = vmatpush.msra.mxu0 0.0
        %882 = vmatpush.msra.mxu0 0.0
        %883 = vmatpush.msra.mxu0 0.0
        %884 = vmatpush.msra.mxu0 %v865
        %885 = vmatpush.msra.mxu0 %v864
        %886 = vmatpush.msra.mxu0 %v863
        %887 = vmatpush.msra.mxu0 %v862
        %888 = vmatmul.f32.gmra.mxu0 %v867
        %v889 = vpop.f32.mrf.mxu0
        %v890 = vadd.f32 0.0, %v889
        %891 = vmatmul.f32.gmra.mxu0 %v870
        %v892 = vpop.f32.mrf.mxu0
        %v893 = vadd.f32 0.0, %v892
        %894 = vdwg.mxu0
        %v895 = vadd.f32 %v854, %v890
        %v896 = vadd.f32 %v857, %v893
        %v897 = vld [vmem:[%s4] sm:$0x1]
        %v899 = vperm.slane %v897, 0
        %v901 = vadd.f32 %v895, %v899
        %v902 = vadd.f32 %v896, %v899
        %v903 = vxor.u32 %v901, 2147483648
        %v904 = vxor.u32 %v902, 2147483648
        %v905 = vmul.f32 %v903, 1.442695
        %v906 = vpow.pop %v905
        %v907 = vmul.f32 %v904, 1.442695
        %v908 = vpow.pop %v907
        %v909 = vadd.f32 %v906, 1.0
        %v910 = vadd.f32 %v908, 1.0
        %v911 = vrcp.pop %v909
        %v912 = vmul.f32 %v909, %v911
        %v913 = vsub.f32 1.0, %v912
        %v914 = vmul.f32 %v911, %v913
        %v915 = vadd.f32 %v911, %v914
        %vm916 = vweird.f32 %v909
        %vm917 = vweird.f32 %v911
        %vm918 = vmor %vm916, %vm917
        %v919 = vsel %vm918, %v911, %v915
        %v920 = vand.u32 2147483647, %v909
        %vm921 = vcmp.eq.f32.partialorder %v920, 8.507059e+37
        %v922 = vand.u32 %v909, 2147483648
        %v923 = vor.u32 1.1754944e-38, %v922
        %v924 = vsel %vm921, %v923, %v919
        %v925 = vmul.f32 1.0, %v924
        %v926 = vrcp.pop %v910
        %v927 = vmul.f32 %v910, %v926
        %v928 = vsub.f32 1.0, %v927
        %v929 = vmul.f32 %v926, %v928
        %v930 = vadd.f32 %v926, %v929
        %vm931 = vweird.f32 %v910
        %vm932 = vweird.f32 %v926
        %vm933 = vmor %vm931, %vm932
        %v934 = vsel %vm933, %v926, %v930
        %v935 = vand.u32 2147483647, %v910
        %vm936 = vcmp.eq.f32.partialorder %v935, 8.507059e+37
        %v937 = vand.u32 %v910, 2147483648
        %v938 = vor.u32 1.1754944e-38, %v937
        %v939 = vsel %vm936, %v938, %v934
        %v940 = vmul.f32 1.0, %v939
        %v941 = vmul.f32 %v901, %v925
        %v942 = vmul.f32 %v902, %v940
        %943 = vst.msk [vmem:[#allocation2 + $0x1] sm:$0xff] %vm620, %v941
        %944 = vst.msk [vmem:[#allocation2 + $0x9] sm:$0xff] %vm620, %v942
        %v945 = vld [vmem:[#allocation2] sm:$0xff]
        %v946 = vld [vmem:[#allocation2 + $0x8] sm:$0xff]
        %v947 = vld [vmem:[#allocation5] sm:$0xff]
        %v948 = vld [vmem:[#allocation5 + $0x8] sm:$0xff]
        %v949 = vld [vmem:[#allocation5 + $0x10] sm:$0xff]
        %v950 = vld [vmem:[#allocation5 + $0x18] sm:$0xff]
        %v951 = vld [vmem:[#allocation2 + $0x1] sm:$0xff]
        %v952 = vld [vmem:[#allocation2 + $0x9] sm:$0xff]
        %s953 = scalar_lea.vmem [#allocation5], 32
        %v954 = vld [vmem:[%s953] sm:$0xff]
        %v955 = vld [vmem:[%s953 + $0x8] sm:$0xff]
        %v956 = vld [vmem:[%s953 + $0x10] sm:$0xff]
        %v957 = vld [vmem:[%s953 + $0x18] sm:$0xff]
        %v959 = vsel %vm620, %v951, 0
        %v962 = vsel %vm620, %v952, 0
        %964 = vmatpush.msra.mxu0 0.0
        %965 = vmatpush.msra.mxu0 0.0
        %966 = vmatpush.msra.mxu0 0.0
        %967 = vmatpush.msra.mxu0 0.0
        %968 = vmatpush.msra.mxu0 0.0
        %969 = vmatpush.msra.mxu0 0.0
        %970 = vmatpush.msra.mxu0 0.0
        %971 = vmatpush.msra.mxu0 0.0
        %972 = vmatpush.msra.mxu0 0.0
        %973 = vmatpush.msra.mxu0 0.0
        %974 = vmatpush.msra.mxu0 0.0
        %975 = vmatpush.msra.mxu0 0.0
        %976 = vmatpush.msra.mxu0 %v957
        %977 = vmatpush.msra.mxu0 %v956
        %978 = vmatpush.msra.mxu0 %v955
        %979 = vmatpush.msra.mxu0 %v954
        %980 = vmatmul.f32.gmra.mxu0 %v959
        %v981 = vpop.f32.mrf.mxu0
        %v982 = vadd.f32 0.0, %v981
        %983 = vmatmul.f32.gmra.mxu0 %v962
        %v984 = vpop.f32.mrf.mxu0
        %v985 = vadd.f32 0.0, %v984
        %986 = vdwg.mxu0
        %v988 = vsel %vm620, %v945, 0
        %v991 = vsel %vm620, %v946, 0
        %993 = vmatpush.msra.mxu0 0.0
        %994 = vmatpush.msra.mxu0 0.0
        %995 = vmatpush.msra.mxu0 0.0
        %996 = vmatpush.msra.mxu0 0.0
        %997 = vmatpush.msra.mxu0 0.0
        %998 = vmatpush.msra.mxu0 0.0
        %999 = vmatpush.msra.mxu0 0.0
        %1000 = vmatpush.msra.mxu0 0.0
        %1001 = vmatpush.msra.mxu0 0.0
        %1002 = vmatpush.msra.mxu0 0.0
        %1003 = vmatpush.msra.mxu0 0.0
        %1004 = vmatpush.msra.mxu0 0.0
        %1005 = vmatpush.msra.mxu0 %v950
        %1006 = vmatpush.msra.mxu0 %v949
        %1007 = vmatpush.msra.mxu0 %v948
        %1008 = vmatpush.msra.mxu0 %v947
        %1009 = vmatmul.f32.gmra.mxu0 %v988
        %v1010 = vpop.f32.mrf.mxu0
        %v1011 = vadd.f32 %v982, %v1010
        %1012 = vmatmul.f32.gmra.mxu0 %v991
        %v1013 = vpop.f32.mrf.mxu0
        %v1014 = vadd.f32 %v985, %v1013
        %1015 = vdwg.mxu0
        %v1016 = vld [vmem:[#allocation2 + $0x2] sm:$0xff]
        %v1017 = vld [vmem:[#allocation2 + $0xa] sm:$0xff]
        %s1018 = scalar_lea.vmem [#allocation5], 64
        %v1019 = vld [vmem:[%s1018] sm:$0xff]
        %v1020 = vld [vmem:[%s1018 + $0x8] sm:$0xff]
        %v1021 = vld [vmem:[%s1018 + $0x10] sm:$0xff]
        %v1022 = vld [vmem:[%s1018 + $0x18] sm:$0xff]
        %v1024 = vsel %vm620, %v1016, 0
        %v1027 = vsel %vm620, %v1017, 0
        %1029 = vmatpush.msra.mxu0 0.0
        %1030 = vmatpush.msra.mxu0 0.0
        %1031 = vmatpush.msra.mxu0 0.0
        %1032 = vmatpush.msra.mxu0 0.0
        %1033 = vmatpush.msra.mxu0 0.0
        %1034 = vmatpush.msra.mxu0 0.0
        %1035 = vmatpush.msra.mxu0 0.0
        %1036 = vmatpush.msra.mxu0 0.0
        %1037 = vmatpush.msra.mxu0 0.0
        %1038 = vmatpush.msra.mxu0 0.0
        %1039 = vmatpush.msra.mxu0 0.0
        %1040 = vmatpush.msra.mxu0 0.0
        %1041 = vmatpush.msra.mxu0 %v1022
        %1042 = vmatpush.msra.mxu0 %v1021
        %1043 = vmatpush.msra.mxu0 %v1020
        %1044 = vmatpush.msra.mxu0 %v1019
        %1045 = vmatmul.f32.gmra.mxu0 %v1024
        %v1046 = vpop.f32.mrf.mxu0
        %v1047 = vadd.f32 0.0, %v1046
        %1048 = vmatmul.f32.gmra.mxu0 %v1027
        %v1049 = vpop.f32.mrf.mxu0
        %v1050 = vadd.f32 0.0, %v1049
        %1051 = vdwg.mxu0
        %v1052 = vadd.f32 %v1011, %v1047
        %v1053 = vadd.f32 %v1014, %v1050
        %v1054 = vld [vmem:[%s6] sm:$0x1]
        %v1056 = vperm.slane %v1054, 0
        %v1058 = vadd.f32 %v1052, %v1056
        %v1059 = vadd.f32 %v1053, %v1056
        %v1060 = vld [vmem:[%s7] sm:$0xff]
        %v1061 = vld [vmem:[#allocation7] sm:$0x1]
        %v1063 = vperm.slane %v1061, 0
        %vm1065 = vcmask 64512
        %v1067 = vsel %vm1065, %v1058, 0
        %v1070 = vsel %vm1065, %v1059, 0
        %1072 = vmatpush.msra.mxu0 0.0
        %1073 = vmatpush.msra.mxu0 0.0
        %1074 = vmatpush.msra.mxu0 0.0
        %1075 = vmatpush.msra.mxu0 0.0
        %1076 = vmatpush.msra.mxu0 0.0
        %1077 = vmatpush.msra.mxu0 0.0
        %1078 = vmatpush.msra.mxu0 0.0
        %1079 = vmatpush.msra.mxu0 0.0
        %1080 = vmatpush.msra.mxu0 0.0
        %1081 = vmatpush.msra.mxu0 0.0
        %1082 = vmatpush.msra.mxu0 0.0
        %1083 = vmatpush.msra.mxu0 0.0
        %1084 = vmatpush.msra.mxu0 0.0
        %1085 = vmatpush.msra.mxu0 0.0
        %1086 = vmatpush.msra.mxu0 0.0
        %1087 = vmatpush.msra.mxu0 %v1060
        %1088 = vmatmul.f32.gmra.mxu0 %v1067
        %v1089 = vpop.f32.mrf.mxu0
        %v1090 = vadd.f32 %v1063, %v1089
        %1091 = vmatmul.f32.gmra.mxu0 %v1070
        %v1092 = vpop.f32.mrf.mxu0
        %v1093 = vadd.f32 %v1063, %v1092
        %1094 = vdwg.mxu0
        %1095 = vst.msk [vmem:[#allocation2 + $0x1] sm:$0xff] %vm1065, %v1090
        %1096 = vst.msk [vmem:[#allocation2 + $0x9] sm:$0xff] %vm1065, %v1093
        %v1097 = vld [vmem:[#allocation2] sm:$0xff]
        %v1098 = vld [vmem:[#allocation2 + $0x8] sm:$0xff]
        %v1099 = vld [vmem:[%s9] sm:$0xff]
        %v1100 = vld [vmem:[#allocation2 + $0x1] sm:$0xff]
        %v1101 = vld [vmem:[#allocation2 + $0x9] sm:$0xff]
        %s1102 = scalar_lea.vmem %s9, 8
        %v1103 = vld [vmem:[%s1102] sm:$0xff]
        %v1105 = vsel %vm1065, %v1100, 0
        %v1108 = vsel %vm1065, %v1101, 0
        %1110 = vmatpush.msra.mxu0 0.0
        %1111 = vmatpush.msra.mxu0 0.0
        %1112 = vmatpush.msra.mxu0 0.0
        %1113 = vmatpush.msra.mxu0 0.0
        %1114 = vmatpush.msra.mxu0 0.0
        %1115 = vmatpush.msra.mxu0 0.0
        %1116 = vmatpush.msra.mxu0 0.0
        %1117 = vmatpush.msra.mxu0 0.0
        %1118 = vmatpush.msra.mxu0 0.0
        %1119 = vmatpush.msra.mxu0 0.0
        %1120 = vmatpush.msra.mxu0 0.0
        %1121 = vmatpush.msra.mxu0 0.0
        %1122 = vmatpush.msra.mxu0 0.0
        %1123 = vmatpush.msra.mxu0 0.0
        %1124 = vmatpush.msra.mxu0 0.0
        %1125 = vmatpush.msra.mxu0 %v1103
        %1126 = vmatmul.f32.gmra.mxu0 %v1105
        %v1127 = vpop.f32.mrf.mxu0
        %v1128 = vadd.f32 0.0, %v1127
        %1129 = vmatmul.f32.gmra.mxu0 %v1108
        %v1130 = vpop.f32.mrf.mxu0
        %v1131 = vadd.f32 0.0, %v1130
        %1132 = vdwg.mxu0
        %v1134 = vsel %vm1065, %v1097, 0
        %v1137 = vsel %vm1065, %v1098, 0
        %1139 = vmatpush.msra.mxu0 0.0
        %1140 = vmatpush.msra.mxu0 0.0
        %1141 = vmatpush.msra.mxu0 0.0
        %1142 = vmatpush.msra.mxu0 0.0
        %1143 = vmatpush.msra.mxu0 0.0
        %1144 = vmatpush.msra.mxu0 0.0
        %1145 = vmatpush.msra.mxu0 0.0
        %1146 = vmatpush.msra.mxu0 0.0
        %1147 = vmatpush.msra.mxu0 0.0
        %1148 = vmatpush.msra.mxu0 0.0
        %1149 = vmatpush.msra.mxu0 0.0
        %1150 = vmatpush.msra.mxu0 0.0
        %1151 = vmatpush.msra.mxu0 0.0
        %1152 = vmatpush.msra.mxu0 0.0
        %1153 = vmatpush.msra.mxu0 0.0
        %1154 = vmatpush.msra.mxu0 %v1099
        %1155 = vmatmul.f32.gmra.mxu0 %v1134
        %v1156 = vpop.f32.mrf.mxu0
        %v1157 = vadd.f32 %v1128, %v1156
        %1158 = vmatmul.f32.gmra.mxu0 %v1137
        %v1159 = vpop.f32.mrf.mxu0
        %v1160 = vadd.f32 %v1131, %v1159
        %1161 = vdwg.mxu0
        %v1162 = vld [vmem:[#allocation2 + $0x2] sm:$0xff]
        %v1163 = vld [vmem:[#allocation2 + $0xa] sm:$0xff]
        %s1164 = scalar_lea.vmem %s9, 16
        %v1165 = vld [vmem:[%s1164] sm:$0xff]
        %v1167 = vsel %vm1065, %v1162, 0
        %v1170 = vsel %vm1065, %v1163, 0
        %1172 = vmatpush.msra.mxu0 0.0
        %1173 = vmatpush.msra.mxu0 0.0
        %1174 = vmatpush.msra.mxu0 0.0
        %1175 = vmatpush.msra.mxu0 0.0
        %1176 = vmatpush.msra.mxu0 0.0
        %1177 = vmatpush.msra.mxu0 0.0
        %1178 = vmatpush.msra.mxu0 0.0
        %1179 = vmatpush.msra.mxu0 0.0
        %1180 = vmatpush.msra.mxu0 0.0
        %1181 = vmatpush.msra.mxu0 0.0
        %1182 = vmatpush.msra.mxu0 0.0
        %1183 = vmatpush.msra.mxu0 0.0
        %1184 = vmatpush.msra.mxu0 0.0
        %1185 = vmatpush.msra.mxu0 0.0
        %1186 = vmatpush.msra.mxu0 0.0
        %1187 = vmatpush.msra.mxu0 %v1165
        %1188 = vmatmul.f32.gmra.mxu0 %v1167
        %v1189 = vpop.f32.mrf.mxu0
        %v1190 = vadd.f32 0.0, %v1189
        %1191 = vmatmul.f32.gmra.mxu0 %v1170
        %v1192 = vpop.f32.mrf.mxu0
        %v1193 = vadd.f32 0.0, %v1192
        %1194 = vdwg.mxu0
        %v1195 = vadd.f32 %v1157, %v1190
        %v1196 = vadd.f32 %v1160, %v1193
        %v1197 = vld [vmem:[#allocation8] sm:$0x1]
        %v1199 = vperm.slane %v1197, 0
        %v1201 = vadd.f32 %v1195, %v1199
        %v1202 = vadd.f32 %v1196, %v1199
        %v1203 = vxor.u32 %v1201, 2147483648
        %v1204 = vxor.u32 %v1202, 2147483648
        %v1205 = vmul.f32 %v1203, 1.442695
        %v1206 = vpow.pop %v1205
        %v1207 = vmul.f32 %v1204, 1.442695
        %v1208 = vpow.pop %v1207
        %v1209 = vadd.f32 %v1206, 1.0
        %v1210 = vadd.f32 %v1208, 1.0
        %v1211 = vrcp.pop %v1209
        %v1212 = vmul.f32 %v1209, %v1211
        %v1213 = vsub.f32 1.0, %v1212
        %v1214 = vmul.f32 %v1211, %v1213
        %v1215 = vadd.f32 %v1211, %v1214
        %vm1216 = vweird.f32 %v1209
        %vm1217 = vweird.f32 %v1211
        %vm1218 = vmor %vm1216, %vm1217
        %v1219 = vsel %vm1218, %v1211, %v1215
        %v1220 = vand.u32 2147483647, %v1209
        %vm1221 = vcmp.eq.f32.partialorder %v1220, 8.507059e+37
        %v1222 = vand.u32 %v1209, 2147483648
        %v1223 = vor.u32 1.1754944e-38, %v1222
        %v1224 = vsel %vm1221, %v1223, %v1219
        %v1225 = vmul.f32 1.0, %v1224
        %v1226 = vrcp.pop %v1210
        %v1227 = vmul.f32 %v1210, %v1226
        %v1228 = vsub.f32 1.0, %v1227
        %v1229 = vmul.f32 %v1226, %v1228
        %v1230 = vadd.f32 %v1226, %v1229
        %vm1231 = vweird.f32 %v1210
        %vm1232 = vweird.f32 %v1226
        %vm1233 = vmor %vm1231, %vm1232
        %v1234 = vsel %vm1233, %v1226, %v1230
        %v1235 = vand.u32 2147483647, %v1210
        %vm1236 = vcmp.eq.f32.partialorder %v1235, 8.507059e+37
        %v1237 = vand.u32 %v1210, 2147483648
        %v1238 = vor.u32 1.1754944e-38, %v1237
        %v1239 = vsel %vm1236, %v1238, %v1234
        %v1240 = vmul.f32 1.0, %v1239
        %v1241 = vmul.f32 %v1201, %v1225
        %v1242 = vmul.f32 %v1202, %v1240
        %1243 = vst.msk [vmem:[#allocation2 + $0x1] sm:$0xff] %vm620, %v1241
        %1244 = vst.msk [vmem:[#allocation2 + $0x9] sm:$0xff] %vm620, %v1242
        %v1245 = vld [vmem:[#allocation2] sm:$0xff]
        %v1246 = vld [vmem:[#allocation2 + $0x8] sm:$0xff]
        %v1247 = vld [vmem:[#allocation10] sm:$0xff]
        %v1248 = vld [vmem:[#allocation10 + $0x8] sm:$0xff]
        %v1249 = vld [vmem:[#allocation10 + $0x10] sm:$0xff]
        %v1250 = vld [vmem:[#allocation10 + $0x18] sm:$0xff]
        %v1251 = vld [vmem:[#allocation2 + $0x1] sm:$0xff]
        %v1252 = vld [vmem:[#allocation2 + $0x9] sm:$0xff]
        %s1253 = scalar_lea.vmem [#allocation10], 32
        %v1254 = vld [vmem:[%s1253] sm:$0xff]
        %v1255 = vld [vmem:[%s1253 + $0x8] sm:$0xff]
        %v1256 = vld [vmem:[%s1253 + $0x10] sm:$0xff]
        %v1257 = vld [vmem:[%s1253 + $0x18] sm:$0xff]
        %v1259 = vsel %vm620, %v1251, 0
        %v1262 = vsel %vm620, %v1252, 0
        %1264 = vmatpush.msra.mxu0 0.0
        %1265 = vmatpush.msra.mxu0 0.0
        %1266 = vmatpush.msra.mxu0 0.0
        %1267 = vmatpush.msra.mxu0 0.0
        %1268 = vmatpush.msra.mxu0 0.0
        %1269 = vmatpush.msra.mxu0 0.0
        %1270 = vmatpush.msra.mxu0 0.0
        %1271 = vmatpush.msra.mxu0 0.0
        %1272 = vmatpush.msra.mxu0 0.0
        %1273 = vmatpush.msra.mxu0 0.0
        %1274 = vmatpush.msra.mxu0 0.0
        %1275 = vmatpush.msra.mxu0 0.0
        %1276 = vmatpush.msra.mxu0 %v1257
        %1277 = vmatpush.msra.mxu0 %v1256
        %1278 = vmatpush.msra.mxu0 %v1255
        %1279 = vmatpush.msra.mxu0 %v1254
        %1280 = vmatmul.f32.gmra.mxu0 %v1259
        %v1281 = vpop.f32.mrf.mxu0
        %v1282 = vadd.f32 0.0, %v1281
        %1283 = vmatmul.f32.gmra.mxu0 %v1262
        %v1284 = vpop.f32.mrf.mxu0
        %v1285 = vadd.f32 0.0, %v1284
        %1286 = vdwg.mxu0
        %v1288 = vsel %vm620, %v1245, 0
        %v1291 = vsel %vm620, %v1246, 0
        %1293 = vmatpush.msra.mxu0 0.0
        %1294 = vmatpush.msra.mxu0 0.0
        %1295 = vmatpush.msra.mxu0 0.0
        %1296 = vmatpush.msra.mxu0 0.0
        %1297 = vmatpush.msra.mxu0 0.0
        %1298 = vmatpush.msra.mxu0 0.0
        %1299 = vmatpush.msra.mxu0 0.0
        %1300 = vmatpush.msra.mxu0 0.0
        %1301 = vmatpush.msra.mxu0 0.0
        %1302 = vmatpush.msra.mxu0 0.0
        %1303 = vmatpush.msra.mxu0 0.0
        %1304 = vmatpush.msra.mxu0 0.0
        %1305 = vmatpush.msra.mxu0 %v1250
        %1306 = vmatpush.msra.mxu0 %v1249
        %1307 = vmatpush.msra.mxu0 %v1248
        %1308 = vmatpush.msra.mxu0 %v1247
        %1309 = vmatmul.f32.gmra.mxu0 %v1288
        %v1310 = vpop.f32.mrf.mxu0
        %v1311 = vadd.f32 %v1282, %v1310
        %1312 = vmatmul.f32.gmra.mxu0 %v1291
        %v1313 = vpop.f32.mrf.mxu0
        %v1314 = vadd.f32 %v1285, %v1313
        %1315 = vdwg.mxu0
        %v1316 = vld [vmem:[#allocation2 + $0x2] sm:$0xff]
        %v1317 = vld [vmem:[#allocation2 + $0xa] sm:$0xff]
        %s1318 = scalar_lea.vmem [#allocation10], 64
        %v1319 = vld [vmem:[%s1318] sm:$0xff]
        %v1320 = vld [vmem:[%s1318 + $0x8] sm:$0xff]
        %v1321 = vld [vmem:[%s1318 + $0x10] sm:$0xff]
        %v1322 = vld [vmem:[%s1318 + $0x18] sm:$0xff]
        %v1324 = vsel %vm620, %v1316, 0
        %v1327 = vsel %vm620, %v1317, 0
        %1329 = vmatpush.msra.mxu0 0.0
        %1330 = vmatpush.msra.mxu0 0.0
        %1331 = vmatpush.msra.mxu0 0.0
        %1332 = vmatpush.msra.mxu0 0.0
        %1333 = vmatpush.msra.mxu0 0.0
        %1334 = vmatpush.msra.mxu0 0.0
        %1335 = vmatpush.msra.mxu0 0.0
        %1336 = vmatpush.msra.mxu0 0.0
        %1337 = vmatpush.msra.mxu0 0.0
        %1338 = vmatpush.msra.mxu0 0.0
        %1339 = vmatpush.msra.mxu0 0.0
        %1340 = vmatpush.msra.mxu0 0.0
        %1341 = vmatpush.msra.mxu0 %v1322
        %1342 = vmatpush.msra.mxu0 %v1321
        %1343 = vmatpush.msra.mxu0 %v1320
        %1344 = vmatpush.msra.mxu0 %v1319
        %1345 = vmatmul.f32.gmra.mxu0 %v1324
        %v1346 = vpop.f32.mrf.mxu0
        %v1347 = vadd.f32 0.0, %v1346
        %1348 = vmatmul.f32.gmra.mxu0 %v1327
        %v1349 = vpop.f32.mrf.mxu0
        %v1350 = vadd.f32 0.0, %v1349
        %1351 = vdwg.mxu0
        %v1352 = vadd.f32 %v1311, %v1347
        %v1353 = vadd.f32 %v1314, %v1350
        %v1354 = vld [vmem:[#allocation11] sm:$0x1]
        %v1356 = vperm.slane %v1354, 0
        %v1358 = vadd.f32 %v1352, %v1356
        %v1359 = vadd.f32 %v1353, %v1356
        %v1360 = vxor.u32 %v1358, 2147483648
        %v1361 = vxor.u32 %v1359, 2147483648
        %v1362 = vmul.f32 %v1360, 1.442695
        %v1363 = vpow.pop %v1362
        %v1364 = vmul.f32 %v1361, 1.442695
        %v1365 = vpow.pop %v1364
        %v1366 = vadd.f32 %v1363, 1.0
        %v1367 = vadd.f32 %v1365, 1.0
        %v1368 = vrcp.pop %v1366
        %v1369 = vmul.f32 %v1366, %v1368
        %v1370 = vsub.f32 1.0, %v1369
        %v1371 = vmul.f32 %v1368, %v1370
        %v1372 = vadd.f32 %v1368, %v1371
        %vm1373 = vweird.f32 %v1366
        %vm1374 = vweird.f32 %v1368
        %vm1375 = vmor %vm1373, %vm1374
        %v1376 = vsel %vm1375, %v1368, %v1372
        %v1377 = vand.u32 2147483647, %v1366
        %vm1378 = vcmp.eq.f32.partialorder %v1377, 8.507059e+37
        %v1379 = vand.u32 %v1366, 2147483648
        %v1380 = vor.u32 1.1754944e-38, %v1379
        %v1381 = vsel %vm1378, %v1380, %v1376
        %v1382 = vmul.f32 1.0, %v1381
        %v1383 = vrcp.pop %v1367
        %v1384 = vmul.f32 %v1367, %v1383
        %v1385 = vsub.f32 1.0, %v1384
        %v1386 = vmul.f32 %v1383, %v1385
        %v1387 = vadd.f32 %v1383, %v1386
        %vm1388 = vweird.f32 %v1367
        %vm1389 = vweird.f32 %v1383
        %vm1390 = vmor %vm1388, %vm1389
        %v1391 = vsel %vm1390, %v1383, %v1387
        %v1392 = vand.u32 2147483647, %v1367
        %vm1393 = vcmp.eq.f32.partialorder %v1392, 8.507059e+37
        %v1394 = vand.u32 %v1367, 2147483648
        %v1395 = vor.u32 1.1754944e-38, %v1394
        %v1396 = vsel %vm1393, %v1395, %v1391
        %v1397 = vmul.f32 1.0, %v1396
        %v1398 = vmul.f32 %v1358, %v1382
        %v1399 = vmul.f32 %v1359, %v1397
        %1400 = vst.msk [vmem:[#allocation2 + $0x1] sm:$0xff] %vm620, %v1398
        %1401 = vst.msk [vmem:[#allocation2 + $0x9] sm:$0xff] %vm620, %v1399
        %v1402 = vld [vmem:[#allocation2] sm:$0xff]
        %v1403 = vld [vmem:[#allocation2 + $0x8] sm:$0xff]
        %v1404 = vld [vmem:[#allocation13] sm:$0xff]
        %v1405 = vld [vmem:[#allocation13 + $0x8] sm:$0xff]
        %v1406 = vld [vmem:[#allocation13 + $0x10] sm:$0xff]
        %v1407 = vld [vmem:[#allocation13 + $0x18] sm:$0xff]
        %v1408 = vld [vmem:[#allocation2 + $0x1] sm:$0xff]
        %v1409 = vld [vmem:[#allocation2 + $0x9] sm:$0xff]
        %s1410 = scalar_lea.vmem [#allocation13], 32
        %v1411 = vld [vmem:[%s1410] sm:$0xff]
        %v1412 = vld [vmem:[%s1410 + $0x8] sm:$0xff]
        %v1413 = vld [vmem:[%s1410 + $0x10] sm:$0xff]
        %v1414 = vld [vmem:[%s1410 + $0x18] sm:$0xff]
        %v1416 = vsel %vm620, %v1408, 0
        %v1419 = vsel %vm620, %v1409, 0
        %1421 = vmatpush.msra.mxu0 0.0
        %1422 = vmatpush.msra.mxu0 0.0
        %1423 = vmatpush.msra.mxu0 0.0
        %1424 = vmatpush.msra.mxu0 0.0
        %1425 = vmatpush.msra.mxu0 0.0
        %1426 = vmatpush.msra.mxu0 0.0
        %1427 = vmatpush.msra.mxu0 0.0
        %1428 = vmatpush.msra.mxu0 0.0
        %1429 = vmatpush.msra.mxu0 0.0
        %1430 = vmatpush.msra.mxu0 0.0
        %1431 = vmatpush.msra.mxu0 0.0
        %1432 = vmatpush.msra.mxu0 0.0
        %1433 = vmatpush.msra.mxu0 %v1414
        %1434 = vmatpush.msra.mxu0 %v1413
        %1435 = vmatpush.msra.mxu0 %v1412
        %1436 = vmatpush.msra.mxu0 %v1411
        %1437 = vmatmul.f32.gmra.mxu0 %v1416
        %v1438 = vpop.f32.mrf.mxu0
        %v1439 = vadd.f32 0.0, %v1438
        %1440 = vmatmul.f32.gmra.mxu0 %v1419
        %v1441 = vpop.f32.mrf.mxu0
        %v1442 = vadd.f32 0.0, %v1441
        %1443 = vdwg.mxu0
        %v1445 = vsel %vm620, %v1402, 0
        %v1448 = vsel %vm620, %v1403, 0
        %1450 = vmatpush.msra.mxu0 0.0
        %1451 = vmatpush.msra.mxu0 0.0
        %1452 = vmatpush.msra.mxu0 0.0
        %1453 = vmatpush.msra.mxu0 0.0
        %1454 = vmatpush.msra.mxu0 0.0
        %1455 = vmatpush.msra.mxu0 0.0
        %1456 = vmatpush.msra.mxu0 0.0
        %1457 = vmatpush.msra.mxu0 0.0
        %1458 = vmatpush.msra.mxu0 0.0
        %1459 = vmatpush.msra.mxu0 0.0
        %1460 = vmatpush.msra.mxu0 0.0
        %1461 = vmatpush.msra.mxu0 0.0
        %1462 = vmatpush.msra.mxu0 %v1407
        %1463 = vmatpush.msra.mxu0 %v1406
        %1464 = vmatpush.msra.mxu0 %v1405
        %1465 = vmatpush.msra.mxu0 %v1404
        %1466 = vmatmul.f32.gmra.mxu0 %v1445
        %v1467 = vpop.f32.mrf.mxu0
        %v1468 = vadd.f32 %v1439, %v1467
        %1469 = vmatmul.f32.gmra.mxu0 %v1448
        %v1470 = vpop.f32.mrf.mxu0
        %v1471 = vadd.f32 %v1442, %v1470
        %1472 = vdwg.mxu0
        %v1473 = vld [vmem:[#allocation2 + $0x2] sm:$0xff]
        %v1474 = vld [vmem:[#allocation2 + $0xa] sm:$0xff]
        %s1475 = scalar_lea.vmem [#allocation13], 64
        %v1476 = vld [vmem:[%s1475] sm:$0xff]
        %v1477 = vld [vmem:[%s1475 + $0x8] sm:$0xff]
        %v1478 = vld [vmem:[%s1475 + $0x10] sm:$0xff]
        %v1479 = vld [vmem:[%s1475 + $0x18] sm:$0xff]
        %v1481 = vsel %vm620, %v1473, 0
        %v1484 = vsel %vm620, %v1474, 0
        %1486 = vmatpush.msra.mxu0 0.0
        %1487 = vmatpush.msra.mxu0 0.0
        %1488 = vmatpush.msra.mxu0 0.0
        %1489 = vmatpush.msra.mxu0 0.0
        %1490 = vmatpush.msra.mxu0 0.0
        %1491 = vmatpush.msra.mxu0 0.0
        %1492 = vmatpush.msra.mxu0 0.0
        %1493 = vmatpush.msra.mxu0 0.0
        %1494 = vmatpush.msra.mxu0 0.0
        %1495 = vmatpush.msra.mxu0 0.0
        %1496 = vmatpush.msra.mxu0 0.0
        %1497 = vmatpush.msra.mxu0 0.0
        %1498 = vmatpush.msra.mxu0 %v1479
        %1499 = vmatpush.msra.mxu0 %v1478
        %1500 = vmatpush.msra.mxu0 %v1477
        %1501 = vmatpush.msra.mxu0 %v1476
        %1502 = vmatmul.f32.gmra.mxu0 %v1481
        %v1503 = vpop.f32.mrf.mxu0
        %v1504 = vadd.f32 0.0, %v1503
        %1505 = vmatmul.f32.gmra.mxu0 %v1484
        %v1506 = vpop.f32.mrf.mxu0
        %v1507 = vadd.f32 0.0, %v1506
        %1508 = vdwg.mxu0
        %v1509 = vadd.f32 %v1468, %v1504
        %v1510 = vadd.f32 %v1471, %v1507
        %v1511 = vld [vmem:[#allocation14] sm:$0x1]
        %v1513 = vperm.slane %v1511, 0
        %v1515 = vadd.f32 %v1509, %v1513
        %v1516 = vadd.f32 %v1510, %v1513
        %1517 = vst.msk [vmem:[%s619] sm:$0xff] %vm627, %v1515
        %1518 = vst.msk [vmem:[%s619 + $0x8] sm:$0xff] %vm627, %v1516
        %p1519 = scmp.lt.s32.totalorder %s31, 1
        %s1520 = scalar_select %p1519, %s31, 1
        %s1521 = smul.addr %s1520, 2
        %s1522 = smul.addr %s1521, 8
        %s1523 = scalar_lea.vmem %s15, %s1522
        // Predicated region
        $region113: #{a_call__.1} parent=79 // pred_check
          %p1524 = pneg %p369
        $region114: #{a_call__.1} parent=79 // pred_check_branch
          %1526 = sbr.rel (%p1524) target = $region116
        $region115: #{a_call__.1} parent=79 // pred_region
          _
        $region116: #{a_call__.1} parent=79 // pred_fallthru
          _
      $region80: #{a_call__.1} parent=5 // pred_fallthru
        _
      %p1527 = scmp.le.s32.totalorder 2, %s26
      // Predicated region
      $region117: #{a_call__.1} parent=5 // pred_check
        %p1528 = pneg %p1527
      $region118: #{a_call__.1} parent=5 // pred_check_branch
        %1530 = sbr.rel (%p1528) target = $region120
      $region119: #{a_call__.1} parent=5 // pred_region
        %s1531 = ssub.s32 %s26, 2
        // Predicated region
        $region121: #{a_call__.1} parent=119 // pred_check
          %p1532 = pneg %p375
        $region122: #{a_call__.1} parent=119 // pred_check_branch
          %1534 = sbr.rel (%p1532) target = $region124
        $region123: #{a_call__.1} parent=119 // pred_region
          %p1535 = scmp.lt.s32.totalorder %s32, 1
          %s1536 = scalar_select %p1535, %s32, 1
          %s1537 = smul.addr %s1536, 2
          %s1538 = smul.addr %s1537, 8
          %s1539 = scalar_lea.vmem %s15, %s1538
        $region124: #{a_call__.1} parent=119 // pred_fallthru
          _
      $region120: #{a_call__.1} parent=5 // pred_fallthru
        _
    $region6: #{a_call__.1} parent=1 // loop_footer
      %s30 = sadd.s32 1, %s26
    $region7: #{a_call__.1} parent=1 // loop_footer_branch
      %25 = sbr.rel target = $region3
    $region8: #{a_call__.1} parent=1 // loop_exit
      _
    %1540 = vsyncpa [#allocation4], 1
    %s1541 = scalar_lea.sflag [#allocation4], 1
    %1542 = vsyncpa %s1541, 1
    %1543 = vsyncpa [#allocation6], 1
    %1544 = vsyncpa [#allocation9], 1
    %1545 = vsyncpa [#allocation12], 1
    %1546 = vsyncpa [#allocation15], 1

</llo_original>
